<compile_context>
chip_gen: v7x
topology: tpu7x:2x2x1
jax: 0.10.0
libtpu: 0.0.40
codegen_flags: <defaults>
</compile_context>

<pallas_src>
import functools

import jax
import jax.numpy as jnp
from jax import lax
from jax.experimental import pallas as pl
from jax.experimental.pallas import tpu as pltpu

LANES = 128
_BASE = 8  # aligned block of leading rows in the flat out1 scratch (never read)


def _round_up(x, m):
    return ((x + m - 1) // m) * m


# --------------------------------- kernel ------------------------------------

def _basic_block_kernel(*refs, Ho, Wo, Wpad, L, cp, projection):
    if projection:
        (p1_ref, w1_ref, b1_ref, w2_ref, b2s_ref,
         o_ref, z_ref, acc_ref) = refs
        xs_ref = None
    else:
        (p1_ref, w1_ref, b1_ref, w2_ref, b2s_ref, xs_ref,
         o_ref, z_ref, acc_ref) = refs

    # ---- conv1 (+ fused 1x1 shortcut columns) on the MXU --------------------
    # One (m1, k1) x (k1, C2) dot.  C2 = 2*cp in the projection case: the
    # shortcut weights live in the centre-tap rows of columns [cp, 2cp), so
    # the 256-wide v6e/v7x MXU is filled and xs needs no separate DMA stream.
    both = jnp.dot(p1_ref[0], w1_ref[...], preferred_element_type=jnp.float32)
    o1 = jnp.maximum(both[:, :cp] + b1_ref[...], 0.0)

    b2s = b2s_ref[...]                       # bn2 bias (+ shortcut-bn bias)
    if projection:
        sc = both[:, cp:] + b2s              # shortcut straight from the dot

    # ---- lay out1 into the flat zero-padded scratch --------------------------
    # Data for output pixel (h, w) lives at row  _BASE + (h+1)*Wpad + w.
    # Only pad rows are zeroed (top/bottom borders + 8-row gaps); data rows
    # are fully overwritten each step, so no full-scratch clear is needed and
    # there is no cross-step scratch dependence (megacore-safe).
    zero_border = jnp.zeros((Wpad, cp), jnp.float32)
    zero_gap = jnp.zeros((Wpad - Wo, cp), jnp.float32)
    z_ref[_BASE:_BASE + Wpad, :] = zero_border                       # top
    bot = _BASE + (Ho + 1) * Wpad
    z_ref[bot:bot + Wpad, :] = zero_border                           # bottom
    for ho in range(Ho):
        dst = _BASE + (ho + 1) * Wpad
        z_ref[dst:dst + Wo, :] = o1[ho * Wo:(ho + 1) * Wo, :]
        z_ref[dst + Wo:dst + Wpad, :] = zero_gap                     # row gap

    # ---- conv2 + bn2 scale: 3 aligned slabs, +/-1 shifts via pltpu.roll -----
    # Per kh one 8-aligned (L, cp) slab load; the kw = 0 / 2 taps are that
    # slab rotated by +/-1 row on the XLU.  The roll wrap-around rows land
    # either on zeroed pad rows or in never-read accumulator rows, so the
    # result is identical to the 9 unaligned slices it replaces.
    for kh in range(3):
        start = _BASE + kh * Wpad            # static, multiple of 8
        base = z_ref[start:start + L, :]
        mid = jnp.dot(base.astype(jnp.bfloat16), w2_ref[kh * 3 + 1],
                      preferred_element_type=jnp.float32)
        lft = jnp.dot(pltpu.roll(base, 1, 0).astype(jnp.bfloat16),
                      w2_ref[kh * 3 + 0], preferred_element_type=jnp.float32)
        rgt = jnp.dot(pltpu.roll(base, L - 1, 0).astype(jnp.bfloat16),
                      w2_ref[kh * 3 + 2], preferred_element_type=jnp.float32)
        part = lft + mid + rgt
        if kh == 0:
            acc_ref[...] = part              # VMEM scratch accumulation
        else:
            acc_ref[...] += part

    # ---- residual add + relu, lane-dense (128-wide) bf16 stores -------------
    for ho in range(Ho):
        acc_blk = acc_ref[ho * Wpad:ho * Wpad + Wo, :]
        if projection:
            sc_blk = sc[ho * Wo:(ho + 1) * Wo, :]
        else:
            # identity residual: exact f32 add on the VPU (no bf16 round-trip)
            sc_blk = xs_ref[0, ho * Wo:(ho + 1) * Wo, :] + b2s
        o_ref[0, ho * Wo:(ho + 1) * Wo, :] = jnp.maximum(
            acc_blk + sc_blk, 0.0).astype(o_ref.dtype)


# ------------------------------- JAX wrapper ----------------------------------

def _fold_bn(gamma, beta, mean, var, eps=1e-5):
    scale = gamma / jnp.sqrt(var + eps)
    bias = beta - mean * scale
    return scale, bias


def _im2col_3x3(x_nhwc, stride):
    """3x3 / pad=1 patches.  Returns (N, Ho*Wo, 9*C), Ho, Wo."""
    N, H, W, C = x_nhwc.shape
    xp = jnp.pad(x_nhwc, ((0, 0), (1, 1), (1, 1), (0, 0)))
    Ho = (H - 1) // stride + 1
    Wo = (W - 1) // stride + 1
    cols = []
    for kh in range(3):
        for kw in range(3):
            cols.append(xp[:, kh:kh + (Ho - 1) * stride + 1:stride,
                            kw:kw + (Wo - 1) * stride + 1:stride, :])
    patches = jnp.stack(cols, axis=3)                # (N, Ho, Wo, 9, C)
    return patches.reshape(N, Ho * Wo, 9 * C), Ho, Wo


def _pad_axis(a, axis, new_size):
    pad = [(0, 0)] * a.ndim
    pad[axis] = (0, new_size - a.shape[axis])
    return jnp.pad(a, pad)


def basic_block_forward(x_nchw, params, stride):
    """Pallas-backed BasicBlock forward (inference BN).  I/O layout: NCHW."""
    x = jnp.transpose(x_nchw, (0, 2, 3, 1)).astype(jnp.float32)    # NHWC
    N, H, W, cin = x.shape
    planes = params["w1"].shape[0]
    projection = (stride != 1) or (cin != planes)

    s1, b1 = _fold_bn(*params["bn1"])
    s2, b2 = _fold_bn(*params["bn2"])

    # conv1 patches (only the block INPUT is im2col'ed; out1 stays in VMEM).
    p1, Ho, Wo = _im2col_3x3(x, stride)
    assert Wo % 8 == 0, "kernel assumes output width is a multiple of 8"
    m1 = Ho * Wo
    cp = _round_up(planes, LANES)            # lane-dense padded channel dim
    k1 = _round_up(9 * cin, 8)               # sublane-aligned K for conv1

    p1 = _pad_axis(p1, 2, k1).astype(jnp.bfloat16)

    # conv1 weights: (Cout,Cin,3,3) -> (9*Cin, Cout), bn1 scale folded in.
    w1m = jnp.transpose(params["w1"], (2, 3, 1, 0)).reshape(9 * cin, planes)
    w1m = _pad_axis(_pad_axis(w1m * s1[None, :], 0, k1), 1, cp)

    if projection:
        # Shortcut 1x1 conv (+bn scale) as extra output columns of the conv1
        # matmul: its input is exactly the centre tap (kh=kw=1) of p1.
        ss, bs = _fold_bn(*params["bn_s"])
        wsm = params["w_s"].reshape(planes, cin).T * ss[None, :]   # (cin, planes)
        wscat = jnp.zeros((k1, cp), jnp.float32)
        wscat = wscat.at[4 * cin:5 * cin, :planes].set(wsm)
        w1cat = jnp.concatenate([w1m, wscat], axis=1)              # (k1, 2cp)
        b2s = b2 + bs                                              # folded biases
    else:
        w1cat = w1m                                                # (k1, cp)
        b2s = b2
    w1cat = w1cat.astype(jnp.bfloat16)
    c2 = w1cat.shape[1]

    b1v = _pad_axis(b1.reshape(1, planes), 1, cp).astype(jnp.float32)
    b2sv = _pad_axis(b2s.reshape(1, planes), 1, cp).astype(jnp.float32)

    # conv2 weights per (kh,kw) tap: (9, Cp, Cp), bn2 scale folded in.
    w2m = jnp.transpose(params["w2"], (2, 3, 1, 0)).reshape(9, planes, planes)
    w2m = _pad_axis(_pad_axis(w2m * s2[None, None, :], 1, cp), 2, cp)
    w2m = w2m.astype(jnp.bfloat16)

    # flat out1 scratch geometry.
    wpad = Wo + 8                 # padded row width (multiple of 8, >= Wo+1)
    L = Ho * wpad                 # rows of the conv2 accumulator / slabs
    z_rows = _BASE + (Ho + 2) * wpad

    kernel = functools.partial(_basic_block_kernel, Ho=Ho, Wo=Wo, Wpad=wpad,
                               L=L, cp=cp, projection=projection)

    in_specs = [
        pl.BlockSpec((1, m1, k1), lambda n: (n, 0, 0)),     # p1
        pl.BlockSpec((k1, c2), lambda n: (0, 0)),           # w1 (+shortcut cols)
        pl.BlockSpec((1, cp), lambda n: (0, 0)),            # b1
        pl.BlockSpec((9, cp, cp), lambda n: (0, 0, 0)),     # w2 taps
        pl.BlockSpec((1, cp), lambda n: (0, 0)),            # b2 (+ shortcut bn)
    ]
    args = [p1, w1cat, b1v, w2m, b2sv]
    if not projection:
        # identity residual stream, kept in f32 for an exact VPU add.
        xs = _pad_axis(x.reshape(N, m1, cin), 2, cp).astype(jnp.float32)
        in_specs.append(pl.BlockSpec((1, m1, cp), lambda n: (n, 0, 0)))
        args.append(xs)

    out = pl.pallas_call(
        kernel,
        out_shape=jax.ShapeDtypeStruct((N, m1, cp), jnp.bfloat16),
        grid_spec=pltpu.PrefetchScalarGridSpec(
            num_scalar_prefetch=0,
            grid=(N,),
            in_specs=in_specs,
            out_specs=pl.BlockSpec((1, m1, cp), lambda n: (n, 0, 0)),
            scratch_shapes=[
                pltpu.VMEM((z_rows, cp), jnp.float32),      # flat out1 scratch
                pltpu.VMEM((L, cp), jnp.float32),           # conv2 accumulator
            ]),
        compiler_params=pltpu.CompilerParams(
            dimension_semantics=("parallel",)),
    )(*args)

    # TODO(synk): when chaining blocks, keep the padded (m1, cp) bf16 layout
    # between blocks instead of re-slicing / transposing after every block.
    out = out[:, :, :planes].astype(jnp.float32).reshape(N, Ho, Wo, planes)
    return jnp.transpose(out, (0, 3, 1, 2))          # back to NCHW


# ----------------------------- pure-JAX reference -----------------------------

def _ref_bn(y, bn):
    gamma, beta, mean, var = bn
    inv = gamma / jnp.sqrt(var + 1e-5)
    return y * inv[None, :, None, None] + (beta - mean * inv)[None, :, None, None]


def ref_forward(x, params, stride):
    dn = ("NCHW", "OIHW", "NCHW")
    out = lax.conv_general_dilated(x, params["w1"], (stride, stride),
                                   ((1, 1), (1, 1)), dimension_numbers=dn)
    out = jnp.maximum(_ref_bn(out, params["bn1"]), 0.0)
    out = lax.conv_general_dilated(out, params["w2"], (1, 1),
                                   ((1, 1), (1, 1)), dimension_numbers=dn)
    out = _ref_bn(out, params["bn2"])
    if stride != 1 or x.shape[1] != params["w1"].shape[0]:
        sc = lax.conv_general_dilated(x, params["w_s"], (stride, stride),
                                      ((0, 0), (0, 0)), dimension_numbers=dn)
        sc = _ref_bn(sc, params["bn_s"])
    else:
        sc = x
    return jnp.maximum(out + sc, 0.0)


# ----------------------------------- main -------------------------------------

if __name__ == "__main__":
    key = jax.random.PRNGKey(0)

    def bn_params(kk, c):
        return (0.5 + jax.random.uniform(kk, (c,), jnp.float32),           # gamma
                0.1 * jax.random.normal(jax.random.fold_in(kk, 1), (c,)),  # beta
                0.05 * jax.random.normal(jax.random.fold_in(kk, 2), (c,)), # mean
                0.5 + jax.random.uniform(jax.random.fold_in(kk, 3), (c,))) # var

    def make_params(kk, cin, planes, with_shortcut):
        ks = jax.random.split(kk, 6)
        p = {
            "w1": 0.1 * jax.random.normal(ks[0], (planes, cin, 3, 3), jnp.float32),
            "bn1": bn_params(ks[1], planes),
            "w2": 0.1 * jax.random.normal(ks[2], (planes, planes, 3, 3), jnp.float32),
            "bn2": bn_params(ks[3], planes),
        }
        if with_shortcut:
            p["w_s"] = 0.1 * jax.random.normal(ks[4], (planes, cin, 1, 1), jnp.float32)
            p["bn_s"] = bn_params(ks[5], planes)
        return p

    def check(name, x, params, stride):
        out = jax.block_until_ready(basic_block_forward(x, params, stride))
        ref = jax.block_until_ready(ref_forward(x, params, stride))
        assert out.shape == ref.shape, (name, out.shape, ref.shape)
        max_err = float(jnp.max(jnp.abs(out - ref)))
        # bf16 MXU inputs + bf16 output store with f32 accumulation
        # -> deliberately loosened tolerance vs. the f32 reference.
        assert jnp.allclose(out, ref, atol=5e-2, rtol=5e-2), \
            f"{name}: mismatch, max err {max_err}"

    ka, kb, kc, kd = jax.random.split(key, 4)

    # Projection shortcut (stride 2, channel change): the downsampling block.
    params_a = make_params(ka, 4, 8, with_shortcut=True)
    x_a = jax.random.normal(kb, (2, 4, 16, 16), jnp.float32)
    check("projection", x_a, params_a, stride=2)

    # Identity shortcut (stride 1, same channels): exercises the f32 VPU
    # residual-add path.
    params_b = make_params(kc, 8, 8, with_shortcut=False)
    x_b = jax.random.normal(kd, (2, 8, 16, 16), jnp.float32)
    check("identity", x_b, params_b, stride=1)

    print("KERNEL_OK")
</pallas_src>

<mosaic_0001>
module attributes {stable_mosaic.version = 11 : i64} {
  func.func @_basic_block_kernel(%arg0: i32, %arg1: memref<1x64x40xbf16, #tpu.memory_space<vmem>>, %arg2: memref<40x256xbf16, #tpu.memory_space<vmem>>, %arg3: memref<1x128xf32, #tpu.memory_space<vmem>>, %arg4: memref<9x128x128xbf16, #tpu.memory_space<vmem>>, %arg5: memref<1x128xf32, #tpu.memory_space<vmem>>, %arg6: memref<1x64x128xbf16, #tpu.memory_space<vmem>>, %arg7: memref<168x128xf32, #tpu.memory_space<vmem>>, %arg8: memref<128x128xf32, #tpu.memory_space<vmem>>) attributes {dimension_semantics = [#tpu.dimension_semantics<parallel>], iteration_bounds = array<i64: 2>, scalar_prefetch = 0 : i64, scratch_operands = 2 : i64, tpu.core_type = #tpu.core_type<tc>, window_params = [{transform_indices = @transform_0, window_bounds = array<i64: 1, 64, 40>}, {pipeline_mode = #tpu.pipeline_mode<synchronous>, transform_indices = @transform_1, window_bounds = array<i64: 40, 256>}, {pipeline_mode = #tpu.pipeline_mode<synchronous>, transform_indices = @transform_2, window_bounds = array<i64: 1, 128>}, {pipeline_mode = #tpu.pipeline_mode<synchronous>, transform_indices = @transform_3, window_bounds = array<i64: 9, 128, 128>}, {pipeline_mode = #tpu.pipeline_mode<synchronous>, transform_indices = @transform_4, window_bounds = array<i64: 1, 128>}, {transform_indices = @transform_5, window_bounds = array<i64: 1, 64, 128>}]} {
    %c0 = arith.constant 0 : index
    %c0_0 = arith.constant 0 : index
    %c0_1 = arith.constant 0 : index
    %0 = vector.load %arg1[%c0, %c0_0, %c0_1] : memref<1x64x40xbf16, #tpu.memory_space<vmem>>, vector<1x64x40xbf16>
    %1 = vector.shape_cast %0 : vector<1x64x40xbf16> to vector<64x40xbf16>
    %c0_2 = arith.constant 0 : index
    %c0_3 = arith.constant 0 : index
    %2 = vector.load %arg2[%c0_2, %c0_3] : memref<40x256xbf16, #tpu.memory_space<vmem>>, vector<40x256xbf16>
    %cst = arith.constant dense<0.000000e+00> : vector<64x256xf32>
    %3 = tpu.matmul %1, %2, %cst {dimension_numbers = #tpu.dot_dimension_numbers<[1], [0], [0], [1], [0, 0, 1, 1], [], []>} : vector<64x40xbf16>, vector<40x256xbf16>, vector<64x256xf32> -> vector<64x256xf32>
    %4 = vector.extract_strided_slice %3 {offsets = [0, 0], sizes = [64, 128], strides = [1, 1]} : vector<64x256xf32> to vector<64x128xf32>
    %c0_4 = arith.constant 0 : index
    %c0_5 = arith.constant 0 : index
    %5 = vector.load %arg3[%c0_4, %c0_5] : memref<1x128xf32, #tpu.memory_space<vmem>>, vector<1x128xf32>
    %6 = vector.broadcast %5 : vector<1x128xf32> to vector<64x128xf32>
    %7 = arith.addf %4, %6 : vector<64x128xf32>
    %cst_6 = arith.constant 0.000000e+00 : f32
    %8 = vector.broadcast %cst_6 : f32 to vector<64x128xf32>
    %9 = arith.maximumf %7, %8 : vector<64x128xf32>
    %c0_7 = arith.constant 0 : index
    %c0_8 = arith.constant 0 : index
    %10 = vector.load %arg5[%c0_7, %c0_8] : memref<1x128xf32, #tpu.memory_space<vmem>>, vector<1x128xf32>
    %11 = vector.extract_strided_slice %3 {offsets = [0, 128], sizes = [64, 128], strides = [1, 1]} : vector<64x256xf32> to vector<64x128xf32>
    %12 = vector.broadcast %10 : vector<1x128xf32> to vector<64x128xf32>
    %13 = arith.addf %11, %12 : vector<64x128xf32>
    %cst_9 = arith.constant 0.000000e+00 : f32
    %14 = vector.broadcast %cst_9 : f32 to vector<16x128xf32>
    %cst_10 = arith.constant 0.000000e+00 : f32
    %15 = vector.broadcast %cst_10 : f32 to vector<8x128xf32>
    %c8 = arith.constant 8 : index
    %c0_11 = arith.constant 0 : index
    %16 = vector.load %arg7[%c8, %c0_11] : memref<168x128xf32, #tpu.memory_space<vmem>>, vector<16x128xf32>
    tpu.vector_store %arg7[%c8, %c0_11], %14 {strides = array<i32>} : memref<168x128xf32, #tpu.memory_space<vmem>>, vector<16x128xf32>,
    %c152 = arith.constant 152 : index
    %c0_12 = arith.constant 0 : index
    %17 = vector.load %arg7[%c152, %c0_12] : memref<168x128xf32, #tpu.memory_space<vmem>>, vector<16x128xf32>
    tpu.vector_store %arg7[%c152, %c0_12], %14 {strides = array<i32>} : memref<168x128xf32, #tpu.memory_space<vmem>>, vector<16x128xf32>,
    %18 = vector.extract_strided_slice %9 {offsets = [0, 0], sizes = [8, 128], strides = [1, 1]} : vector<64x128xf32> to vector<8x128xf32>
    %c24 = arith.constant 24 : index
    %c0_13 = arith.constant 0 : index
    %19 = vector.load %arg7[%c24, %c0_13] : memref<168x128xf32, #tpu.memory_space<vmem>>, vector<8x128xf32>
    tpu.vector_store %arg7[%c24, %c0_13], %18 {strides = array<i32>} : memref<168x128xf32, #tpu.memory_space<vmem>>, vector<8x128xf32>,
    %c32 = arith.constant 32 : index
    %c0_14 = arith.constant 0 : index
    %20 = vector.load %arg7[%c32, %c0_14] : memref<168x128xf32, #tpu.memory_space<vmem>>, vector<8x128xf32>
    tpu.vector_store %arg7[%c32, %c0_14], %15 {strides = array<i32>} : memref<168x128xf32, #tpu.memory_space<vmem>>, vector<8x128xf32>,
    %21 = vector.extract_strided_slice %9 {offsets = [8, 0], sizes = [8, 128], strides = [1, 1]} : vector<64x128xf32> to vector<8x128xf32>
    %c40 = arith.constant 40 : index
    %c0_15 = arith.constant 0 : index
    %22 = vector.load %arg7[%c40, %c0_15] : memref<168x128xf32, #tpu.memory_space<vmem>>, vector<8x128xf32>
    tpu.vector_store %arg7[%c40, %c0_15], %21 {strides = array<i32>} : memref<168x128xf32, #tpu.memory_space<vmem>>, vector<8x128xf32>,
    %c48 = arith.constant 48 : index
    %c0_16 = arith.constant 0 : index
    %23 = vector.load %arg7[%c48, %c0_16] : memref<168x128xf32, #tpu.memory_space<vmem>>, vector<8x128xf32>
    tpu.vector_store %arg7[%c48, %c0_16], %15 {strides = array<i32>} : memref<168x128xf32, #tpu.memory_space<vmem>>, vector<8x128xf32>,
    %24 = vector.extract_strided_slice %9 {offsets = [16, 0], sizes = [8, 128], strides = [1, 1]} : vector<64x128xf32> to vector<8x128xf32>
    %c56 = arith.constant 56 : index
    %c0_17 = arith.constant 0 : index
    %25 = vector.load %arg7[%c56, %c0_17] : memref<168x128xf32, #tpu.memory_space<vmem>>, vector<8x128xf32>
    tpu.vector_store %arg7[%c56, %c0_17], %24 {strides = array<i32>} : memref<168x128xf32, #tpu.memory_space<vmem>>, vector<8x128xf32>,
    %c64 = arith.constant 64 : index
    %c0_18 = arith.constant 0 : index
    %26 = vector.load %arg7[%c64, %c0_18] : memref<168x128xf32, #tpu.memory_space<vmem>>, vector<8x128xf32>
    tpu.vector_store %arg7[%c64, %c0_18], %15 {strides = array<i32>} : memref<168x128xf32, #tpu.memory_space<vmem>>, vector<8x128xf32>,
    %27 = vector.extract_strided_slice %9 {offsets = [24, 0], sizes = [8, 128], strides = [1, 1]} : vector<64x128xf32> to vector<8x128xf32>
    %c72 = arith.constant 72 : index
    %c0_19 = arith.constant 0 : index
    %28 = vector.load %arg7[%c72, %c0_19] : memref<168x128xf32, #tpu.memory_space<vmem>>, vector<8x128xf32>
    tpu.vector_store %arg7[%c72, %c0_19], %27 {strides = array<i32>} : memref<168x128xf32, #tpu.memory_space<vmem>>, vector<8x128xf32>,
    %c80 = arith.constant 80 : index
    %c0_20 = arith.constant 0 : index
    %29 = vector.load %arg7[%c80, %c0_20] : memref<168x128xf32, #tpu.memory_space<vmem>>, vector<8x128xf32>
    tpu.vector_store %arg7[%c80, %c0_20], %15 {strides = array<i32>} : memref<168x128xf32, #tpu.memory_space<vmem>>, vector<8x128xf32>,
    %30 = vector.extract_strided_slice %9 {offsets = [32, 0], sizes = [8, 128], strides = [1, 1]} : vector<64x128xf32> to vector<8x128xf32>
    %c88 = arith.constant 88 : index
    %c0_21 = arith.constant 0 : index
    %31 = vector.load %arg7[%c88, %c0_21] : memref<168x128xf32, #tpu.memory_space<vmem>>, vector<8x128xf32>
    tpu.vector_store %arg7[%c88, %c0_21], %30 {strides = array<i32>} : memref<168x128xf32, #tpu.memory_space<vmem>>, vector<8x128xf32>,
    %c96 = arith.constant 96 : index
    %c0_22 = arith.constant 0 : index
    %32 = vector.load %arg7[%c96, %c0_22] : memref<168x128xf32, #tpu.memory_space<vmem>>, vector<8x128xf32>
    tpu.vector_store %arg7[%c96, %c0_22], %15 {strides = array<i32>} : memref<168x128xf32, #tpu.memory_space<vmem>>, vector<8x128xf32>,
    %33 = vector.extract_strided_slice %9 {offsets = [40, 0], sizes = [8, 128], strides = [1, 1]} : vector<64x128xf32> to vector<8x128xf32>
    %c104 = arith.constant 104 : index
    %c0_23 = arith.constant 0 : index
    %34 = vector.load %arg7[%c104, %c0_23] : memref<168x128xf32, #tpu.memory_space<vmem>>, vector<8x128xf32>
    tpu.vector_store %arg7[%c104, %c0_23], %33 {strides = array<i32>} : memref<168x128xf32, #tpu.memory_space<vmem>>, vector<8x128xf32>,
    %c112 = arith.constant 112 : index
    %c0_24 = arith.constant 0 : index
    %35 = vector.load %arg7[%c112, %c0_24] : memref<168x128xf32, #tpu.memory_space<vmem>>, vector<8x128xf32>
    tpu.vector_store %arg7[%c112, %c0_24], %15 {strides = array<i32>} : memref<168x128xf32, #tpu.memory_space<vmem>>, vector<8x128xf32>,
    %36 = vector.extract_strided_slice %9 {offsets = [48, 0], sizes = [8, 128], strides = [1, 1]} : vector<64x128xf32> to vector<8x128xf32>
    %c120 = arith.constant 120 : index
    %c0_25 = arith.constant 0 : index
    %37 = vector.load %arg7[%c120, %c0_25] : memref<168x128xf32, #tpu.memory_space<vmem>>, vector<8x128xf32>
    tpu.vector_store %arg7[%c120, %c0_25], %36 {strides = array<i32>} : memref<168x128xf32, #tpu.memory_space<vmem>>, vector<8x128xf32>,
    %c128 = arith.constant 128 : index
    %c0_26 = arith.constant 0 : index
    %38 = vector.load %arg7[%c128, %c0_26] : memref<168x128xf32, #tpu.memory_space<vmem>>, vector<8x128xf32>
    tpu.vector_store %arg7[%c128, %c0_26], %15 {strides = array<i32>} : memref<168x128xf32, #tpu.memory_space<vmem>>, vector<8x128xf32>,
    %39 = vector.extract_strided_slice %9 {offsets = [56, 0], sizes = [8, 128], strides = [1, 1]} : vector<64x128xf32> to vector<8x128xf32>
    %c136 = arith.constant 136 : index
    %c0_27 = arith.constant 0 : index
    %40 = vector.load %arg7[%c136, %c0_27] : memref<168x128xf32, #tpu.memory_space<vmem>>, vector<8x128xf32>
    tpu.vector_store %arg7[%c136, %c0_27], %39 {strides = array<i32>} : memref<168x128xf32, #tpu.memory_space<vmem>>, vector<8x128xf32>,
    %c144 = arith.constant 144 : index
    %c0_28 = arith.constant 0 : index
    %41 = vector.load %arg7[%c144, %c0_28] : memref<168x128xf32, #tpu.memory_space<vmem>>, vector<8x128xf32>
    tpu.vector_store %arg7[%c144, %c0_28], %15 {strides = array<i32>} : memref<168x128xf32, #tpu.memory_space<vmem>>, vector<8x128xf32>,
    %c8_29 = arith.constant 8 : index
    %c0_30 = arith.constant 0 : index
    %42 = vector.load %arg7[%c8_29, %c0_30] : memref<168x128xf32, #tpu.memory_space<vmem>>, vector<128x128xf32>
    %43 = arith.truncf %42 : vector<128x128xf32> to vector<128x128xbf16>
    %c1 = arith.constant 1 : index
    %c0_31 = arith.constant 0 : index
    %c0_32 = arith.constant 0 : index
    %44 = vector.load %arg4[%c1, %c0_31, %c0_32] : memref<9x128x128xbf16, #tpu.memory_space<vmem>>, vector<1x128x128xbf16>
    %45 = vector.shape_cast %44 : vector<1x128x128xbf16> to vector<128x128xbf16>
    %cst_33 = arith.constant dense<0.000000e+00> : vector<128x128xf32>
    %46 = tpu.matmul %43, %45, %cst_33 {dimension_numbers = #tpu.dot_dimension_numbers<[1], [0], [0], [1], [0, 0, 1, 1], [], []>} : vector<128x128xbf16>, vector<128x128xbf16>, vector<128x128xf32> -> vector<128x128xf32>
    %c1_i32 = arith.constant 1 : i32
    %47 = tpu.dynamic_rotate %42 by %c1_i32 dim 0 : vector<128x128xf32>, i32 -> vector<128x128xf32>
    %48 = arith.truncf %47 : vector<128x128xf32> to vector<128x128xbf16>
    %c0_34 = arith.constant 0 : index
    %c0_35 = arith.constant 0 : index
    %c0_36 = arith.constant 0 : index
    %49 = vector.load %arg4[%c0_34, %c0_35, %c0_36] : memref<9x128x128xbf16, #tpu.memory_space<vmem>>, vector<1x128x128xbf16>
    %50 = vector.shape_cast %49 : vector<1x128x128xbf16> to vector<128x128xbf16>
    %cst_37 = arith.constant dense<0.000000e+00> : vector<128x128xf32>
    %51 = tpu.matmul %48, %50, %cst_37 {dimension_numbers = #tpu.dot_dimension_numbers<[1], [0], [0], [1], [0, 0, 1, 1], [], []>} : vector<128x128xbf16>, vector<128x128xbf16>, vector<128x128xf32> -> vector<128x128xf32>
    %c127_i32 = arith.constant 127 : i32
    %52 = tpu.dynamic_rotate %42 by %c127_i32 dim 0 : vector<128x128xf32>, i32 -> vector<128x128xf32>
    %53 = arith.truncf %52 : vector<128x128xf32> to vector<128x128xbf16>
    %c2 = arith.constant 2 : index
    %c0_38 = arith.constant 0 : index
    %c0_39 = arith.constant 0 : index
    %54 = vector.load %arg4[%c2, %c0_38, %c0_39] : memref<9x128x128xbf16, #tpu.memory_space<vmem>>, vector<1x128x128xbf16>
    %55 = vector.shape_cast %54 : vector<1x128x128xbf16> to vector<128x128xbf16>
    %cst_40 = arith.constant dense<0.000000e+00> : vector<128x128xf32>
    %56 = tpu.matmul %53, %55, %cst_40 {dimension_numbers = #tpu.dot_dimension_numbers<[1], [0], [0], [1], [0, 0, 1, 1], [], []>} : vector<128x128xbf16>, vector<128x128xbf16>, vector<128x128xf32> -> vector<128x128xf32>
    %57 = arith.addf %51, %46 : vector<128x128xf32>
    %58 = arith.addf %57, %56 : vector<128x128xf32>
    %c0_41 = arith.constant 0 : index
    %c0_42 = arith.constant 0 : index
    %59 = vector.load %arg8[%c0_41, %c0_42] : memref<128x128xf32, #tpu.memory_space<vmem>>, vector<128x128xf32>
    tpu.vector_store %arg8[%c0_41, %c0_42], %58 {strides = array<i32>} : memref<128x128xf32, #tpu.memory_space<vmem>>, vector<128x128xf32>,
    %c24_43 = arith.constant 24 : index
    %c0_44 = arith.constant 0 : index
    %60 = vector.load %arg7[%c24_43, %c0_44] : memref<168x128xf32, #tpu.memory_space<vmem>>, vector<128x128xf32>
    %61 = arith.truncf %60 : vector<128x128xf32> to vector<128x128xbf16>
    %c4 = arith.constant 4 : index
    %c0_45 = arith.constant 0 : index
    %c0_46 = arith.constant 0 : index
    %62 = vector.load %arg4[%c4, %c0_45, %c0_46] : memref<9x128x128xbf16, #tpu.memory_space<vmem>>, vector<1x128x128xbf16>
    %63 = vector.shape_cast %62 : vector<1x128x128xbf16> to vector<128x128xbf16>
    %cst_47 = arith.constant dense<0.000000e+00> : vector<128x128xf32>
    %64 = tpu.matmul %61, %63, %cst_47 {dimension_numbers = #tpu.dot_dimension_numbers<[1], [0], [0], [1], [0, 0, 1, 1], [], []>} : vector<128x128xbf16>, vector<128x128xbf16>, vector<128x128xf32> -> vector<128x128xf32>
    %c1_i32_48 = arith.constant 1 : i32
    %65 = tpu.dynamic_rotate %60 by %c1_i32_48 dim 0 : vector<128x128xf32>, i32 -> vector<128x128xf32>
    %66 = arith.truncf %65 : vector<128x128xf32> to vector<128x128xbf16>
    %c3 = arith.constant 3 : index
    %c0_49 = arith.constant 0 : index
    %c0_50 = arith.constant 0 : index
    %67 = vector.load %arg4[%c3, %c0_49, %c0_50] : memref<9x128x128xbf16, #tpu.memory_space<vmem>>, vector<1x128x128xbf16>
    %68 = vector.shape_cast %67 : vector<1x128x128xbf16> to vector<128x128xbf16>
    %cst_51 = arith.constant dense<0.000000e+00> : vector<128x128xf32>
    %69 = tpu.matmul %66, %68, %cst_51 {dimension_numbers = #tpu.dot_dimension_numbers<[1], [0], [0], [1], [0, 0, 1, 1], [], []>} : vector<128x128xbf16>, vector<128x128xbf16>, vector<128x128xf32> -> vector<128x128xf32>
    %c127_i32_52 = arith.constant 127 : i32
    %70 = tpu.dynamic_rotate %60 by %c127_i32_52 dim 0 : vector<128x128xf32>, i32 -> vector<128x128xf32>
    %71 = arith.truncf %70 : vector<128x128xf32> to vector<128x128xbf16>
    %c5 = arith.constant 5 : index
    %c0_53 = arith.constant 0 : index
    %c0_54 = arith.constant 0 : index
    %72 = vector.load %arg4[%c5, %c0_53, %c0_54] : memref<9x128x128xbf16, #tpu.memory_space<vmem>>, vector<1x128x128xbf16>
    %73 = vector.shape_cast %72 : vector<1x128x128xbf16> to vector<128x128xbf16>
    %cst_55 = arith.constant dense<0.000000e+00> : vector<128x128xf32>
    %74 = tpu.matmul %71, %73, %cst_55 {dimension_numbers = #tpu.dot_dimension_numbers<[1], [0], [0], [1], [0, 0, 1, 1], [], []>} : vector<128x128xbf16>, vector<128x128xbf16>, vector<128x128xf32> -> vector<128x128xf32>
    %75 = arith.addf %69, %64 : vector<128x128xf32>
    %76 = arith.addf %75, %74 : vector<128x128xf32>
    %c0_56 = arith.constant 0 : index
    %c0_57 = arith.constant 0 : index
    %77 = vector.load %arg8[%c0_56, %c0_57] : memref<128x128xf32, #tpu.memory_space<vmem>>, vector<128x128xf32>
    %78 = arith.addf %77, %76 : vector<128x128xf32>
    %c0_58 = arith.constant 0 : index
    %c0_59 = arith.constant 0 : index
    %79 = vector.load %arg8[%c0_58, %c0_59] : memref<128x128xf32, #tpu.memory_space<vmem>>, vector<128x128xf32>
    tpu.vector_store %arg8[%c0_58, %c0_59], %78 {strides = array<i32>} : memref<128x128xf32, #tpu.memory_space<vmem>>, vector<128x128xf32>,
    %c40_60 = arith.constant 40 : index
    %c0_61 = arith.constant 0 : index
    %80 = vector.load %arg7[%c40_60, %c0_61] : memref<168x128xf32, #tpu.memory_space<vmem>>, vector<128x128xf32>
    %81 = arith.truncf %80 : vector<128x128xf32> to vector<128x128xbf16>
    %c7 = arith.constant 7 : index
    %c0_62 = arith.constant 0 : index
    %c0_63 = arith.constant 0 : index
    %82 = vector.load %arg4[%c7, %c0_62, %c0_63] : memref<9x128x128xbf16, #tpu.memory_space<vmem>>, vector<1x128x128xbf16>
    %83 = vector.shape_cast %82 : vector<1x128x128xbf16> to vector<128x128xbf16>
    %cst_64 = arith.constant dense<0.000000e+00> : vector<128x128xf32>
    %84 = tpu.matmul %81, %83, %cst_64 {dimension_numbers = #tpu.dot_dimension_numbers<[1], [0], [0], [1], [0, 0, 1, 1], [], []>} : vector<128x128xbf16>, vector<128x128xbf16>, vector<128x128xf32> -> vector<128x128xf32>
    %c1_i32_65 = arith.constant 1 : i32
    %85 = tpu.dynamic_rotate %80 by %c1_i32_65 dim 0 : vector<128x128xf32>, i32 -> vector<128x128xf32>
    %86 = arith.truncf %85 : vector<128x128xf32> to vector<128x128xbf16>
    %c6 = arith.constant 6 : index
    %c0_66 = arith.constant 0 : index
    %c0_67 = arith.constant 0 : index
    %87 = vector.load %arg4[%c6, %c0_66, %c0_67] : memref<9x128x128xbf16, #tpu.memory_space<vmem>>, vector<1x128x128xbf16>
    %88 = vector.shape_cast %87 : vector<1x128x128xbf16> to vector<128x128xbf16>
    %cst_68 = arith.constant dense<0.000000e+00> : vector<128x128xf32>
    %89 = tpu.matmul %86, %88, %cst_68 {dimension_numbers = #tpu.dot_dimension_numbers<[1], [0], [0], [1], [0, 0, 1, 1], [], []>} : vector<128x128xbf16>, vector<128x128xbf16>, vector<128x128xf32> -> vector<128x128xf32>
    %c127_i32_69 = arith.constant 127 : i32
    %90 = tpu.dynamic_rotate %80 by %c127_i32_69 dim 0 : vector<128x128xf32>, i32 -> vector<128x128xf32>
    %91 = arith.truncf %90 : vector<128x128xf32> to vector<128x128xbf16>
    %c8_70 = arith.constant 8 : index
    %c0_71 = arith.constant 0 : index
    %c0_72 = arith.constant 0 : index
    %92 = vector.load %arg4[%c8_70, %c0_71, %c0_72] : memref<9x128x128xbf16, #tpu.memory_space<vmem>>, vector<1x128x128xbf16>
    %93 = vector.shape_cast %92 : vector<1x128x128xbf16> to vector<128x128xbf16>
    %cst_73 = arith.constant dense<0.000000e+00> : vector<128x128xf32>
    %94 = tpu.matmul %91, %93, %cst_73 {dimension_numbers = #tpu.dot_dimension_numbers<[1], [0], [0], [1], [0, 0, 1, 1], [], []>} : vector<128x128xbf16>, vector<128x128xbf16>, vector<128x128xf32> -> vector<128x128xf32>
    %95 = arith.addf %89, %84 : vector<128x128xf32>
    %96 = arith.addf %95, %94 : vector<128x128xf32>
    %c0_74 = arith.constant 0 : index
    %c0_75 = arith.constant 0 : index
    %97 = vector.load %arg8[%c0_74, %c0_75] : memref<128x128xf32, #tpu.memory_space<vmem>>, vector<128x128xf32>
    %98 = arith.addf %97, %96 : vector<128x128xf32>
    %c0_76 = arith.constant 0 : index
    %c0_77 = arith.constant 0 : index
    %99 = vector.load %arg8[%c0_76, %c0_77] : memref<128x128xf32, #tpu.memory_space<vmem>>, vector<128x128xf32>
    tpu.vector_store %arg8[%c0_76, %c0_77], %98 {strides = array<i32>} : memref<128x128xf32, #tpu.memory_space<vmem>>, vector<128x128xf32>,
    %c0_78 = arith.constant 0 : index
    %c0_79 = arith.constant 0 : index
    %100 = vector.load %arg8[%c0_78, %c0_79] : memref<128x128xf32, #tpu.memory_space<vmem>>, vector<8x128xf32>
    %101 = vector.extract_strided_slice %13 {offsets = [0, 0], sizes = [8, 128], strides = [1, 1]} : vector<64x128xf32> to vector<8x128xf32>
    %102 = arith.addf %100, %101 : vector<8x128xf32>
    %cst_80 = arith.constant 0.000000e+00 : f32
    %103 = vector.broadcast %cst_80 : f32 to vector<8x128xf32>
    %104 = arith.maximumf %102, %103 : vector<8x128xf32>
    %105 = arith.truncf %104 : vector<8x128xf32> to vector<8x128xbf16>
    %c0_81 = arith.constant 0 : index
    %c0_82 = arith.constant 0 : index
    %c0_83 = arith.constant 0 : index
    %106 = vector.load %arg6[%c0_81, %c0_82, %c0_83] : memref<1x64x128xbf16, #tpu.memory_space<vmem>>, vector<1x8x128xbf16>
    %107 = vector.shape_cast %106 : vector<1x8x128xbf16> to vector<8x128xbf16>
    %108 = vector.shape_cast %105 : vector<8x128xbf16> to vector<1x8x128xbf16>
    tpu.vector_store %arg6[%c0_81, %c0_82, %c0_83], %108 {strides = array<i32>} : memref<1x64x128xbf16, #tpu.memory_space<vmem>>, vector<1x8x128xbf16>,
    %c16 = arith.constant 16 : index
    %c0_84 = arith.constant 0 : index
    %109 = vector.load %arg8[%c16, %c0_84] : memref<128x128xf32, #tpu.memory_space<vmem>>, vector<8x128xf32>
    %110 = vector.extract_strided_slice %13 {offsets = [8, 0], sizes = [8, 128], strides = [1, 1]} : vector<64x128xf32> to vector<8x128xf32>
    %111 = arith.addf %109, %110 : vector<8x128xf32>
    %cst_85 = arith.constant 0.000000e+00 : f32
    %112 = vector.broadcast %cst_85 : f32 to vector<8x128xf32>
    %113 = arith.maximumf %111, %112 : vector<8x128xf32>
    %114 = arith.truncf %113 : vector<8x128xf32> to vector<8x128xbf16>
    %c0_86 = arith.constant 0 : index
    %c8_87 = arith.constant 8 : index
    %c0_88 = arith.constant 0 : index
    %115 = vector.load %arg6[%c0_86, %c8_87, %c0_88] : memref<1x64x128xbf16, #tpu.memory_space<vmem>>, vector<1x8x128xbf16>
    %116 = vector.shape_cast %115 : vector<1x8x128xbf16> to vector<8x128xbf16>
    %117 = vector.shape_cast %114 : vector<8x128xbf16> to vector<1x8x128xbf16>
    tpu.vector_store %arg6[%c0_86, %c8_87, %c0_88], %117 {strides = array<i32>} : memref<1x64x128xbf16, #tpu.memory_space<vmem>>, vector<1x8x128xbf16>,
    %c32_89 = arith.constant 32 : index
    %c0_90 = arith.constant 0 : index
    %118 = vector.load %arg8[%c32_89, %c0_90] : memref<128x128xf32, #tpu.memory_space<vmem>>, vector<8x128xf32>
    %119 = vector.extract_strided_slice %13 {offsets = [16, 0], sizes = [8, 128], strides = [1, 1]} : vector<64x128xf32> to vector<8x128xf32>
    %120 = arith.addf %118, %119 : vector<8x128xf32>
    %cst_91 = arith.constant 0.000000e+00 : f32
    %121 = vector.broadcast %cst_91 : f32 to vector<8x128xf32>
    %122 = arith.maximumf %120, %121 : vector<8x128xf32>
    %123 = arith.truncf %122 : vector<8x128xf32> to vector<8x128xbf16>
    %c0_92 = arith.constant 0 : index
    %c16_93 = arith.constant 16 : index
    %c0_94 = arith.constant 0 : index
    %124 = vector.load %arg6[%c0_92, %c16_93, %c0_94] : memref<1x64x128xbf16, #tpu.memory_space<vmem>>, vector<1x8x128xbf16>
    %125 = vector.shape_cast %124 : vector<1x8x128xbf16> to vector<8x128xbf16>
    %126 = vector.shape_cast %123 : vector<8x128xbf16> to vector<1x8x128xbf16>
    tpu.vector_store %arg6[%c0_92, %c16_93, %c0_94], %126 {strides = array<i32>} : memref<1x64x128xbf16, #tpu.memory_space<vmem>>, vector<1x8x128xbf16>,
    %c48_95 = arith.constant 48 : index
    %c0_96 = arith.constant 0 : index
    %127 = vector.load %arg8[%c48_95, %c0_96] : memref<128x128xf32, #tpu.memory_space<vmem>>, vector<8x128xf32>
    %128 = vector.extract_strided_slice %13 {offsets = [24, 0], sizes = [8, 128], strides = [1, 1]} : vector<64x128xf32> to vector<8x128xf32>
    %129 = arith.addf %127, %128 : vector<8x128xf32>
    %cst_97 = arith.constant 0.000000e+00 : f32
    %130 = vector.broadcast %cst_97 : f32 to vector<8x128xf32>
    %131 = arith.maximumf %129, %130 : vector<8x128xf32>
    %132 = arith.truncf %131 : vector<8x128xf32> to vector<8x128xbf16>
    %c0_98 = arith.constant 0 : index
    %c24_99 = arith.constant 24 : index
    %c0_100 = arith.constant 0 : index
    %133 = vector.load %arg6[%c0_98, %c24_99, %c0_100] : memref<1x64x128xbf16, #tpu.memory_space<vmem>>, vector<1x8x128xbf16>
    %134 = vector.shape_cast %133 : vector<1x8x128xbf16> to vector<8x128xbf16>
    %135 = vector.shape_cast %132 : vector<8x128xbf16> to vector<1x8x128xbf16>
    tpu.vector_store %arg6[%c0_98, %c24_99, %c0_100], %135 {strides = array<i32>} : memref<1x64x128xbf16, #tpu.memory_space<vmem>>, vector<1x8x128xbf16>,
    %c64_101 = arith.constant 64 : index
    %c0_102 = arith.constant 0 : index
    %136 = vector.load %arg8[%c64_101, %c0_102] : memref<128x128xf32, #tpu.memory_space<vmem>>, vector<8x128xf32>
    %137 = vector.extract_strided_slice %13 {offsets = [32, 0], sizes = [8, 128], strides = [1, 1]} : vector<64x128xf32> to vector<8x128xf32>
    %138 = arith.addf %136, %137 : vector<8x128xf32>
    %cst_103 = arith.constant 0.000000e+00 : f32
    %139 = vector.broadcast %cst_103 : f32 to vector<8x128xf32>
    %140 = arith.maximumf %138, %139 : vector<8x128xf32>
    %141 = arith.truncf %140 : vector<8x128xf32> to vector<8x128xbf16>
    %c0_104 = arith.constant 0 : index
    %c32_105 = arith.constant 32 : index
    %c0_106 = arith.constant 0 : index
    %142 = vector.load %arg6[%c0_104, %c32_105, %c0_106] : memref<1x64x128xbf16, #tpu.memory_space<vmem>>, vector<1x8x128xbf16>
    %143 = vector.shape_cast %142 : vector<1x8x128xbf16> to vector<8x128xbf16>
    %144 = vector.shape_cast %141 : vector<8x128xbf16> to vector<1x8x128xbf16>
    tpu.vector_store %arg6[%c0_104, %c32_105, %c0_106], %144 {strides = array<i32>} : memref<1x64x128xbf16, #tpu.memory_space<vmem>>, vector<1x8x128xbf16>,
    %c80_107 = arith.constant 80 : index
    %c0_108 = arith.constant 0 : index
    %145 = vector.load %arg8[%c80_107, %c0_108] : memref<128x128xf32, #tpu.memory_space<vmem>>, vector<8x128xf32>
    %146 = vector.extract_strided_slice %13 {offsets = [40, 0], sizes = [8, 128], strides = [1, 1]} : vector<64x128xf32> to vector<8x128xf32>
    %147 = arith.addf %145, %146 : vector<8x128xf32>
    %cst_109 = arith.constant 0.000000e+00 : f32
    %148 = vector.broadcast %cst_109 : f32 to vector<8x128xf32>
    %149 = arith.maximumf %147, %148 : vector<8x128xf32>
    %150 = arith.truncf %149 : vector<8x128xf32> to vector<8x128xbf16>
    %c0_110 = arith.constant 0 : index
    %c40_111 = arith.constant 40 : index
    %c0_112 = arith.constant 0 : index
    %151 = vector.load %arg6[%c0_110, %c40_111, %c0_112] : memref<1x64x128xbf16, #tpu.memory_space<vmem>>, vector<1x8x128xbf16>
    %152 = vector.shape_cast %151 : vector<1x8x128xbf16> to vector<8x128xbf16>
    %153 = vector.shape_cast %150 : vector<8x128xbf16> to vector<1x8x128xbf16>
    tpu.vector_store %arg6[%c0_110, %c40_111, %c0_112], %153 {strides = array<i32>} : memref<1x64x128xbf16, #tpu.memory_space<vmem>>, vector<1x8x128xbf16>,
    %c96_113 = arith.constant 96 : index
    %c0_114 = arith.constant 0 : index
    %154 = vector.load %arg8[%c96_113, %c0_114] : memref<128x128xf32, #tpu.memory_space<vmem>>, vector<8x128xf32>
    %155 = vector.extract_strided_slice %13 {offsets = [48, 0], sizes = [8, 128], strides = [1, 1]} : vector<64x128xf32> to vector<8x128xf32>
    %156 = arith.addf %154, %155 : vector<8x128xf32>
    %cst_115 = arith.constant 0.000000e+00 : f32
    %157 = vector.broadcast %cst_115 : f32 to vector<8x128xf32>
    %158 = arith.maximumf %156, %157 : vector<8x128xf32>
    %159 = arith.truncf %158 : vector<8x128xf32> to vector<8x128xbf16>
    %c0_116 = arith.constant 0 : index
    %c48_117 = arith.constant 48 : index
    %c0_118 = arith.constant 0 : index
    %160 = vector.load %arg6[%c0_116, %c48_117, %c0_118] : memref<1x64x128xbf16, #tpu.memory_space<vmem>>, vector<1x8x128xbf16>
    %161 = vector.shape_cast %160 : vector<1x8x128xbf16> to vector<8x128xbf16>
    %162 = vector.shape_cast %159 : vector<8x128xbf16> to vector<1x8x128xbf16>
    tpu.vector_store %arg6[%c0_116, %c48_117, %c0_118], %162 {strides = array<i32>} : memref<1x64x128xbf16, #tpu.memory_space<vmem>>, vector<1x8x128xbf16>,
    %c112_119 = arith.constant 112 : index
    %c0_120 = arith.constant 0 : index
    %163 = vector.load %arg8[%c112_119, %c0_120] : memref<128x128xf32, #tpu.memory_space<vmem>>, vector<8x128xf32>
    %164 = vector.extract_strided_slice %13 {offsets = [56, 0], sizes = [8, 128], strides = [1, 1]} : vector<64x128xf32> to vector<8x128xf32>
    %165 = arith.addf %163, %164 : vector<8x128xf32>
    %cst_121 = arith.constant 0.000000e+00 : f32
    %166 = vector.broadcast %cst_121 : f32 to vector<8x128xf32>
    %167 = arith.maximumf %165, %166 : vector<8x128xf32>
    %168 = arith.truncf %167 : vector<8x128xf32> to vector<8x128xbf16>
    %c0_122 = arith.constant 0 : index
    %c56_123 = arith.constant 56 : index
    %c0_124 = arith.constant 0 : index
    %169 = vector.load %arg6[%c0_122, %c56_123, %c0_124] : memref<1x64x128xbf16, #tpu.memory_space<vmem>>, vector<1x8x128xbf16>
    %170 = vector.shape_cast %169 : vector<1x8x128xbf16> to vector<8x128xbf16>
    %171 = vector.shape_cast %168 : vector<8x128xbf16> to vector<1x8x128xbf16>
    tpu.vector_store %arg6[%c0_122, %c56_123, %c0_124], %171 {strides = array<i32>} : memref<1x64x128xbf16, #tpu.memory_space<vmem>>, vector<1x8x128xbf16>,
    return
  }
  func.func @transform_0(%arg0: i32) -> (i32, i32, i32) {
    %c0_i32 = arith.constant 0 : i32
    %c0_i32_0 = arith.constant 0 : i32
    %c0_i32_1 = arith.constant 0 : i32
    return %arg0, %c0_i32, %c0_i32_0 : i32, i32, i32
  }
  func.func @transform_1(%arg0: i32) -> (i32, i32) {
    %c0_i32 = arith.constant 0 : i32
    %c0_i32_0 = arith.constant 0 : i32
    %c0_i32_1 = arith.constant 0 : i32
    return %c0_i32, %c0_i32_0 : i32, i32
  }
  func.func @transform_2(%arg0: i32) -> (i32, i32) {
    %c0_i32 = arith.constant 0 : i32
    %c0_i32_0 = arith.constant 0 : i32
    %c0_i32_1 = arith.constant 0 : i32
    return %c0_i32, %c0_i32_0 : i32, i32
  }
  func.func @transform_3(%arg0: i32) -> (i32, i32, i32) {
    %c0_i32 = arith.constant 0 : i32
    %c0_i32_0 = arith.constant 0 : i32
    %c0_i32_1 = arith.constant 0 : i32
    %c0_i32_2 = arith.constant 0 : i32
    return %c0_i32, %c0_i32_0, %c0_i32_1 : i32, i32, i32
  }
  func.func @transform_4(%arg0: i32) -> (i32, i32) {
    %c0_i32 = arith.constant 0 : i32
    %c0_i32_0 = arith.constant 0 : i32
    %c0_i32_1 = arith.constant 0 : i32
    return %c0_i32, %c0_i32_0 : i32, i32
  }
  func.func @transform_5(%arg0: i32) -> (i32, i32, i32) {
    %c0_i32 = arith.constant 0 : i32
    %c0_i32_0 = arith.constant 0 : i32
    %c0_i32_1 = arith.constant 0 : i32
    return %arg0, %c0_i32, %c0_i32_0 : i32, i32, i32
  }
}

</mosaic_0001>

<llo_original>
// kernel: tpu_custom_call.1
$region0: #{tpu_custom_call.1}
  #allocation0 [shape = 'u32[]', space=smem, size = 0x4, offset = 0x4, fixed_abs, tag = 'smem constant byte address 0x4 - core index']
  #allocation1 [shape = 'u32[144,128]{1,0:T(1,128)}', space=vmem, size = 0x12000, scoped, tag = 'internal scratch']
  #allocation2 [shape = 'f32[168,128]{1,0:T(8,128)}', space=vmem, size = 0x15000, scoped, tag = 'scratch operand']
  #allocation3 [shape = 'f32[128,128]{1,0:T(8,128)}', space=vmem, size = 0x10000, scoped, tag = 'scratch operand']
  %s0 = inlined_call_operand.vmem [shape: bf16[2,64,40], index: 0, kind: input, shape index: {}]
  %s1 = inlined_call_operand.vmem [shape: bf16[40,256], index: 1, kind: input, shape index: {}]
  %s2 = inlined_call_operand.vmem [shape: f32[1,128], index: 2, kind: input, shape index: {}]
  %s3 = inlined_call_operand.hbm [shape: bf16[9,128,128], index: 3, kind: input, shape index: {}]
  %s4 = inlined_call_operand.vmem [shape: f32[1,128], index: 4, kind: input, shape index: {}]
  %s5 = inlined_call_operand.hbm [shape: bf16[2,64,128], index: 5, kind: output, shape index: {}]
  %s6 = sld [smem:[#allocation0]]
  $region57: #{tpu_custom_call.1} parent=0
    _
  %s8 = ssub.s32 1, %s6
  %s9 = scalar_select 0, %s8, %s6
  $region1: #{tpu_custom_call.1} parent=0
    #allocation4 [shape = 'u8[294912]{0}', space=vmem, size = 0x48000, scoped, tag = 'input window, operand 3, single buffered']
    #allocation5 [shape = 's32[2]{0}', space=sflag, size = 0x8, scoped, tag = 'scoped memory for tpu_custom_call.1']
    #allocation6 [shape = 's32[2]{0}', space=sflag, size = 0x8, scoped, tag = 'scoped memory for tpu_custom_call.1']
    #allocation7 [shape = 'u8[32768]{0}', space=vmem, size = 0x8000, scoped, tag = 'output window, operand 0']
    %10 = vsyncpa [#allocation5], 0
    %11 = vsyncpa [#allocation6], 0
    %s12 = scalar_lea.sflag [#allocation6], 1
    %13 = vsyncpa %s12, 0
    loop: start=0, step=1, limit=4
    $region2: #{tpu_custom_call.1} parent=1 // loop_pre_header
      _
    $region3: #{tpu_custom_call.1} parent=1 // loop_header
      %s15 = sphi 0, %s19
      %p16 = scmp.ge.s32.totalorder %s15, 4
      %s25 = sphi 0, %s27
      %s28 = sphi 0, %s25
      %s29 = sphi 0, %s28
      %s45 = sphi 0, %s29
      %s49 = sphi 0, %s49
      %s51 = sphi 0, %s49
      %s52 = sphi 0, %s51
      %s66 = sphi 0, %s52
      %s70 = sphi 0, %s70
      %s72 = sphi 0, %s70
      %s73 = sphi 0, %s72
      %s87 = sphi 0, %s73
      %s91 = sphi 0, %s91
      %s93 = sphi 0, %s91
      %s94 = sphi 0, %s93
      %s108 = sphi 0, %s94
      %s112 = sphi 0, %s112
      %s114 = sphi 0, %s112
      %s115 = sphi 0, %s114
      %s129 = sphi 0, %s115
      %s135 = sphi 0, %s137
      %s138 = sphi 0, %s135
      %s139 = sphi 0, %s138
      %s155 = sphi 0, %s139
    $region4: #{tpu_custom_call.1} parent=1 // loop_header_branch
      %18 = sbr.rel (%p16) target = $region8
    $region5: #{tpu_custom_call.1} parent=1 // loop_body
      %s20 = ssub.s32 %s15, 1
      %s21 = ssub.s32 %s15, 2
      %s22 = sadd.s32 %s15, 1
      %s23 = ssub.s32 %s15, %s22
      %p24 = scmp.eq.s32.totalorder %s23, 0
      %s26 = sadd.s32 %s25, 1
      %s27 = scalar_select %p24, %s25, %s26
      %p30 = pneg %p24
      %p31 = scmp.eq.s32.totalorder %s15, 1
      %p32 = por %p30, %p31
      %p33 = scmp.ne.s32.totalorder %s25, %s28
      %p34 = scmp.eq.s32.totalorder %s15, 0
      %p35 = por %p33, %p34
      %p36 = scmp.ne.s32.totalorder %s25, %s28
      %p37 = scmp.eq.s32.totalorder %s20, 1
      %p38 = por %p36, %p37
      %p39 = scmp.ne.s32.totalorder %s28, %s29
      %p40 = scmp.eq.s32.totalorder %s20, 0
      %p41 = por %p39, %p40
      %p42 = scmp.ne.s32.totalorder %s28, %s29
      %p43 = scmp.eq.s32.totalorder %s21, 1
      %p44 = por %p42, %p43
      %p46 = scmp.ne.s32.totalorder %s29, %s45
      %p47 = scmp.eq.s32.totalorder %s21, 0
      %p48 = por %p46, %p47
      %s50 = sadd.s32 %s49, 1
      %p53 = scmp.eq.s32.totalorder %s15, 1
      %p54 = scmp.ne.s32.totalorder %s49, %s51
      %p55 = scmp.eq.s32.totalorder %s15, 0
      %p56 = por %p54, %p55
      %p57 = scmp.ne.s32.totalorder %s49, %s51
      %p58 = scmp.eq.s32.totalorder %s20, 1
      %p59 = por %p57, %p58
      %p60 = scmp.ne.s32.totalorder %s51, %s52
      %p61 = scmp.eq.s32.totalorder %s20, 0
      %p62 = por %p60, %p61
      %p63 = scmp.ne.s32.totalorder %s51, %s52
      %p64 = scmp.eq.s32.totalorder %s21, 1
      %p65 = por %p63, %p64
      %p67 = scmp.ne.s32.totalorder %s52, %s66
      %p68 = scmp.eq.s32.totalorder %s21, 0
      %p69 = por %p67, %p68
      %s71 = sadd.s32 %s70, 1
      %p74 = scmp.eq.s32.totalorder %s15, 1
      %p75 = scmp.ne.s32.totalorder %s70, %s72
      %p76 = scmp.eq.s32.totalorder %s15, 0
      %p77 = por %p75, %p76
      %p78 = scmp.ne.s32.totalorder %s70, %s72
      %p79 = scmp.eq.s32.totalorder %s20, 1
      %p80 = por %p78, %p79
      %p81 = scmp.ne.s32.totalorder %s72, %s73
      %p82 = scmp.eq.s32.totalorder %s20, 0
      %p83 = por %p81, %p82
      %p84 = scmp.ne.s32.totalorder %s72, %s73
      %p85 = scmp.eq.s32.totalorder %s21, 1
      %p86 = por %p84, %p85
      %p88 = scmp.ne.s32.totalorder %s73, %s87
      %p89 = scmp.eq.s32.totalorder %s21, 0
      %p90 = por %p88, %p89
      %s92 = sadd.s32 %s91, 1
      %p95 = scmp.eq.s32.totalorder %s15, 1
      %p96 = scmp.ne.s32.totalorder %s91, %s93
      %p97 = scmp.eq.s32.totalorder %s15, 0
      %p98 = por %p96, %p97
      %p99 = scmp.ne.s32.totalorder %s91, %s93
      %p100 = scmp.eq.s32.totalorder %s20, 1
      %p101 = por %p99, %p100
      %p102 = scmp.ne.s32.totalorder %s93, %s94
      %p103 = scmp.eq.s32.totalorder %s20, 0
      %p104 = por %p102, %p103
      %p105 = scmp.ne.s32.totalorder %s93, %s94
      %p106 = scmp.eq.s32.totalorder %s21, 1
      %p107 = por %p105, %p106
      %p109 = scmp.ne.s32.totalorder %s94, %s108
      %p110 = scmp.eq.s32.totalorder %s21, 0
      %p111 = por %p109, %p110
      %s113 = sadd.s32 %s112, 1
      %p116 = scmp.eq.s32.totalorder %s15, 1
      %p117 = scmp.ne.s32.totalorder %s112, %s114
      %p118 = scmp.eq.s32.totalorder %s15, 0
      %p119 = por %p117, %p118
      %p120 = scmp.ne.s32.totalorder %s112, %s114
      %p121 = scmp.eq.s32.totalorder %s20, 1
      %p122 = por %p120, %p121
      %p123 = scmp.ne.s32.totalorder %s114, %s115
      %p124 = scmp.eq.s32.totalorder %s20, 0
      %p125 = por %p123, %p124
      %p126 = scmp.ne.s32.totalorder %s114, %s115
      %p127 = scmp.eq.s32.totalorder %s21, 1
      %p128 = por %p126, %p127
      %p130 = scmp.ne.s32.totalorder %s115, %s129
      %p131 = scmp.eq.s32.totalorder %s21, 0
      %p132 = por %p130, %p131
      %s133 = ssub.s32 %s15, %s22
      %p134 = scmp.eq.s32.totalorder %s133, 0
      %s136 = sadd.s32 %s135, 1
      %s137 = scalar_select %p134, %s135, %s136
      %p140 = pneg %p134
      %p141 = scmp.eq.s32.totalorder %s15, 1
      %p142 = por %p140, %p141
      %p143 = scmp.ne.s32.totalorder %s135, %s138
      %p144 = scmp.eq.s32.totalorder %s15, 0
      %p145 = por %p143, %p144
      %p146 = scmp.ne.s32.totalorder %s135, %s138
      %p147 = scmp.eq.s32.totalorder %s20, 1
      %p148 = por %p146, %p147
      %p149 = scmp.ne.s32.totalorder %s138, %s139
      %p150 = scmp.eq.s32.totalorder %s20, 0
      %p151 = por %p149, %p150
      %p152 = scmp.ne.s32.totalorder %s138, %s139
      %p153 = scmp.eq.s32.totalorder %s21, 1
      %p154 = por %p152, %p153
      %p156 = scmp.ne.s32.totalorder %s139, %s155
      %p157 = scmp.eq.s32.totalorder %s21, 0
      %p158 = por %p156, %p157
      %p159 = scmp.le.s32.totalorder 1, %s15
      %p160 = scmp.lt.s32.totalorder %s15, 3
      %p161 = pnand %p159, %p160
      %p162 = pneg %p161
      // Predicated region
      $region9: #{tpu_custom_call.1} parent=5 // pred_check
        _
      $region10: #{tpu_custom_call.1} parent=5 // pred_check_branch
        %164 = sbr.rel (%p161) target = $region12
      $region11: #{tpu_custom_call.1} parent=5 // pred_region
        %s165 = ssub.s32 %s15, 1
        // Predicated region
        $region13: #{tpu_custom_call.1} parent=11 // pred_check
          %p166 = pneg %p62
        $region14: #{tpu_custom_call.1} parent=11 // pred_check_branch
          %168 = sbr.rel (%p166) target = $region16
        $region15: #{tpu_custom_call.1} parent=11 // pred_region
          _
        $region16: #{tpu_custom_call.1} parent=11 // pred_fallthru
          _
        // Predicated region
        $region17: #{tpu_custom_call.1} parent=11 // pred_check
          %p169 = pneg %p83
        $region18: #{tpu_custom_call.1} parent=11 // pred_check_branch
          %171 = sbr.rel (%p169) target = $region20
        $region19: #{tpu_custom_call.1} parent=11 // pred_region
          _
        $region20: #{tpu_custom_call.1} parent=11 // pred_fallthru
          _
        // Predicated region
        $region21: #{tpu_custom_call.1} parent=11 // pred_check
          %p172 = pneg %p104
        $region22: #{tpu_custom_call.1} parent=11 // pred_check_branch
          %174 = sbr.rel (%p172) target = $region24
        $region23: #{tpu_custom_call.1} parent=11 // pred_region
          %s176 = ssub.s32 9216, 9216
          %177 = vsyncadd [#allocation5], %s176
          %s178 = sshll.u32 [#allocation4], 4
          %s179 = int_to_ptr.vmem [resolvable:$true] %s178
          %184 = dma.hbm_to_vmem [thread:$0]  %s3, 9216, %s179, [#allocation5], 64, 64, 4
        $region24: #{tpu_custom_call.1} parent=11 // pred_fallthru
          _
        // Predicated region
        $region25: #{tpu_custom_call.1} parent=11 // pred_check
          %p185 = pneg %p125
        $region26: #{tpu_custom_call.1} parent=11 // pred_check_branch
          %187 = sbr.rel (%p185) target = $region28
        $region27: #{tpu_custom_call.1} parent=11 // pred_region
          _
        $region28: #{tpu_custom_call.1} parent=11 // pred_fallthru
          _
      $region12: #{tpu_custom_call.1} parent=5 // pred_fallthru
        _
      %p188 = scmp.lt.s32.totalorder %s15, 2
      // Predicated region
      $region29: #{tpu_custom_call.1} parent=5 // pred_check
        %p189 = pneg %p188
      $region30: #{tpu_custom_call.1} parent=5 // pred_check_branch
        %191 = sbr.rel (%p189) target = $region32
      $region31: #{tpu_custom_call.1} parent=5 // pred_region
        // Predicated region
        $region33: #{tpu_custom_call.1} parent=31 // pred_check
          %p192 = pneg %p35
        $region34: #{tpu_custom_call.1} parent=31 // pred_check_branch
          %194 = sbr.rel (%p192) target = $region36
        $region35: #{tpu_custom_call.1} parent=31 // pred_region
          %p195 = scmp.lt.s32.totalorder %s15, 1
          %s196 = scalar_select %p195, %s15, 1
          %s197 = smul.addr %s196, 8
          %s198 = smul.addr %s197, 4
          %s199 = scalar_lea.vmem %s0, %s198
        $region36: #{tpu_custom_call.1} parent=31 // pred_fallthru
          _
      $region32: #{tpu_custom_call.1} parent=5 // pred_fallthru
        _
      %p200 = scmp.le.s32.totalorder 1, %s15
      %p201 = scmp.lt.s32.totalorder %s15, 3
      %p202 = pnand %p200, %p201
      %p203 = pneg %p202
      // Predicated region
      $region37: #{tpu_custom_call.1} parent=5 // pred_check
        _
      $region38: #{tpu_custom_call.1} parent=5 // pred_check_branch
        %205 = sbr.rel (%p202) target = $region40
      $region39: #{tpu_custom_call.1} parent=5 // pred_region
        %s206 = ssub.s32 %s15, 1
        // Predicated region
        $region41: #{tpu_custom_call.1} parent=39 // pred_check
          %p207 = pneg %p104
        $region42: #{tpu_custom_call.1} parent=39 // pred_check_branch
          %209 = sbr.rel (%p207) target = $region44
        $region43: #{tpu_custom_call.1} parent=39 // pred_region
          %210 = dma.done [#allocation5], 9216
        $region44: #{tpu_custom_call.1} parent=39 // pred_fallthru
          _
        %p211 = scmp.lt.s32.totalorder %s20, 1
        %s212 = scalar_select %p211, %s20, 1
        %s213 = smul.addr %s212, 8
        %s214 = smul.addr %s213, 4
        %s215 = scalar_lea.vmem %s0, %s214
        %p216 = pneg %p41
        %p217 = pneg %p38
        %p218 = pneg %p62
        %p219 = pneg %p59
        %p220 = pneg %p83
        %p221 = pneg %p80
        %p222 = pneg %p104
        %p223 = pneg %p101
        %p224 = pneg %p125
        %p225 = pneg %p122
        %p226 = pneg %p151
        %p227 = pneg %p148
        %s228 = sand.u32 %s138, 1
        %s229 = scalar_lea.sflag [#allocation6], %s228
        %s230 = sand.u32 %s138, 1
        %s231 = smul.addr %s230, 32
        %s232 = scalar_lea.vmem [#allocation7], %s231
        %p233 = scmp.lt.s32.totalorder %s20, 1
        %s234 = scalar_select %p233, %s20, 1
        %s235 = smul.addr %s234, 8
        %s236 = smul.addr %s235, 4
        %s237 = scalar_lea.vmem %s0, %s236
        %v239 = vld [vmem:[%s237] sm:$0xf]
        %v240 = vld [vmem:[%s237 + $0x4] sm:$0xf]
        %v241 = vld [vmem:[%s237 + $0x8] sm:$0xf]
        %v242 = vld [vmem:[%s237 + $0xc] sm:$0xf]
        %v243 = vld [vmem:[%s237 + $0x10] sm:$0xf]
        %v244 = vld [vmem:[%s237 + $0x14] sm:$0xf]
        %v245 = vld [vmem:[%s237 + $0x18] sm:$0xf]
        %v246 = vld [vmem:[%s237 + $0x1c] sm:$0xf]
        %v247 = vld [vmem:[%s1] sm:$0xff]
        %v248 = vld [vmem:[%s1 + $0x8] sm:$0xff]
        %v249 = vld [vmem:[%s1 + $0x10] sm:$0xff]
        %v250 = vld [vmem:[%s1 + $0x18] sm:$0xff]
        %v251 = vld [vmem:[%s1 + $0x20] sm:$0xff]
        %v260 = vunpack.c.l.b16 %v239
        %v261 = vunpack.c.l.b16 %v240
        %v262 = vunpack.c.l.b16 %v241
        %v263 = vunpack.c.l.b16 %v242
        %v264 = vunpack.c.l.b16 %v243
        %v265 = vunpack.c.l.b16 %v244
        %v266 = vunpack.c.l.b16 %v245
        %v267 = vunpack.c.l.b16 %v246
        %v268 = vpack.c.b16 %v261, %v260
        %v269 = vpack.c.b16 %v263, %v262
        %v270 = vpack.c.b16 %v265, %v264
        %v271 = vpack.c.b16 %v267, %v266
        %v277 = vunpack.c.l.b16 %v247
        %v278 = vunpack.c.h.b16 %v247
        %v279 = vunpack.c.l.b16 %v248
        %v280 = vunpack.c.h.b16 %v248
        %v281 = vunpack.c.l.b16 %v249
        %v282 = vunpack.c.h.b16 %v249
        %v283 = vunpack.c.l.b16 %v250
        %v284 = vunpack.c.h.b16 %v250
        %v285 = vunpack.c.l.b16 %v251
        %v286 = vunpack.c.h.b16 %v251
        %v287 = vpack.c.b16 %v279, %v277
        %v288 = vpack.c.b16 %v280, %v278
        %v289 = vpack.c.b16 %v283, %v281
        %v290 = vpack.c.b16 %v284, %v282
        %v291 = vpack.c.b16 %v285, %v285
        %v292 = vpack.c.b16 %v286, %v286
        %vm297 = vcmask 326656
        %v299 = vsel %vm297, %v268, 0
        %v302 = vsel %vm297, %v269, 0
        %v305 = vsel %vm297, %v270, 0
        %v308 = vsel %vm297, %v271, 0
        %vm310 = vcmask 1043456
        %v312 = vsel %vm310, %v291, 0
        %v315 = vsel %vm310, %v292, 0
        %317 = vmatprep.subr.bf16.mxu0 %v288
        %318 = vmatpush1.bf16.msra.mxu0 %v287
        %319 = vmatprep.subr.bf16.mxu0 %v290
        %320 = vmatpush1.bf16.msra.mxu0 %v289
        %321 = vmatprep.subr.bf16.mxu0 %v315
        %322 = vmatpush1.bf16.msra.mxu0 %v312
        %323 = vmatprep.subr.bf16.mxu0 0
        %324 = vmatpush1.bf16.msra.mxu0 0
        %325 = vmatprep.subr.bf16.mxu0 0
        %326 = vmatpush1.bf16.msra.mxu0 0
        %327 = vmatprep.subr.bf16.mxu0 0
        %328 = vmatpush1.bf16.msra.mxu0 0
        %329 = vmatprep.subr.bf16.mxu0 0
        %330 = vmatpush1.bf16.msra.mxu0 0
        %331 = vmatprep.subr.bf16.mxu0 0
        %332 = vmatpush1.bf16.msra.mxu0 0
        %333 = vmatprep.subr.bf16.mxu0 0
        %334 = vmatpush1.bf16.msra.mxu0 0
        %335 = vmatprep.subr.bf16.mxu0 0
        %336 = vmatpush1.bf16.msra.mxu0 0
        %337 = vmatprep.subr.bf16.mxu0 0
        %338 = vmatpush1.bf16.msra.mxu0 0
        %339 = vmatprep.subr.bf16.mxu0 0
        %340 = vmatpush1.bf16.msra.mxu0 0
        %341 = vmatprep.subr.bf16.mxu0 0
        %342 = vmatpush1.bf16.msra.mxu0 0
        %343 = vmatprep.subr.bf16.mxu0 0
        %344 = vmatpush1.bf16.msra.mxu0 0
        %345 = vmatprep.subr.bf16.mxu0 0
        %346 = vmatpush1.bf16.msra.mxu0 0
        %347 = vmatprep.subr.bf16.mxu0 0
        %348 = vmatpush1.bf16.msra.mxu0 0
        %349 = vmatprep.mubr.bf16.mxu0 0
        %350 = vmatmul.mubr.bf16.gmra.mrb[0].mxu0 %v299
        %v351 = vpop.f32.mrb[0].mxu0
        %v352 = vadd.f32 0.0, %v351
        %v353 = vpop.f32.mrb[0].mxu0
        %v354 = vadd.f32 0.0, %v353
        %v355 = vpop.f32.mrb[0].mxu0
        %v356 = vadd.f32 0.0, %v355
        %v357 = vpop.f32.mrb[0].mxu0
        %v358 = vadd.f32 0.0, %v357
        %359 = vmatprep.mubr.bf16.mxu0 0
        %360 = vmatmul.mubr.bf16.gmra.mrb[0].mxu0 %v302
        %v361 = vpop.f32.mrb[0].mxu0
        %v362 = vadd.f32 0.0, %v361
        %v363 = vpop.f32.mrb[0].mxu0
        %v364 = vadd.f32 0.0, %v363
        %v365 = vpop.f32.mrb[0].mxu0
        %v366 = vadd.f32 0.0, %v365
        %v367 = vpop.f32.mrb[0].mxu0
        %v368 = vadd.f32 0.0, %v367
        %369 = vmatprep.mubr.bf16.mxu0 0
        %370 = vmatmul.mubr.bf16.gmra.mrb[0].mxu0 %v305
        %v371 = vpop.f32.mrb[0].mxu0
        %v372 = vadd.f32 0.0, %v371
        %v373 = vpop.f32.mrb[0].mxu0
        %v374 = vadd.f32 0.0, %v373
        %v375 = vpop.f32.mrb[0].mxu0
        %v376 = vadd.f32 0.0, %v375
        %v377 = vpop.f32.mrb[0].mxu0
        %v378 = vadd.f32 0.0, %v377
        %379 = vmatprep.mubr.bf16.mxu0 0
        %380 = vmatmul.mubr.bf16.gmra.mrb[0].mxu0 %v308
        %v381 = vpop.f32.mrb[0].mxu0
        %v382 = vadd.f32 0.0, %v381
        %v383 = vpop.f32.mrb[0].mxu0
        %v384 = vadd.f32 0.0, %v383
        %v385 = vpop.f32.mrb[0].mxu0
        %v386 = vadd.f32 0.0, %v385
        %v387 = vpop.f32.mrb[0].mxu0
        %v388 = vadd.f32 0.0, %v387
        %389 = vdwg.mxu0
        %v390 = vld [vmem:[%s2] sm:$0x1]
        %v392 = vlaneseq
        %v393 = vshrl.u32 %v392, 7
        %v394 = vsub.s32 0, %v393
        %v395 = vrot.slane %v390, %v394
        %v397 = vadd.f32 %v352, %v395
        %v398 = vadd.f32 %v356, %v395
        %v399 = vadd.f32 %v362, %v395
        %v400 = vadd.f32 %v366, %v395
        %v401 = vadd.f32 %v372, %v395
        %v402 = vadd.f32 %v376, %v395
        %v403 = vadd.f32 %v382, %v395
        %v404 = vadd.f32 %v386, %v395
        %v405 = vmax.f32 %v397, 0.0
        %v406 = vmax.f32 %v398, 0.0
        %v407 = vmax.f32 %v399, 0.0
        %v408 = vmax.f32 %v400, 0.0
        %v409 = vmax.f32 %v401, 0.0
        %v410 = vmax.f32 %v402, 0.0
        %v411 = vmax.f32 %v403, 0.0
        %v412 = vmax.f32 %v404, 0.0
        %v413 = vld [vmem:[%s4] sm:$0x1]
        %v415 = vlaneseq
        %v416 = vshrl.u32 %v415, 7
        %v417 = vsub.s32 0, %v416
        %v418 = vrot.slane %v413, %v417
        %v420 = vadd.f32 %v354, %v418
        %v421 = vadd.f32 %v358, %v418
        %v422 = vadd.f32 %v364, %v418
        %v423 = vadd.f32 %v368, %v418
        %v424 = vadd.f32 %v374, %v418
        %v425 = vadd.f32 %v378, %v418
        %v426 = vadd.f32 %v384, %v418
        %v427 = vadd.f32 %v388, %v418
        %428 = vst [vmem:[#allocation2 + $0x8] sm:$0xff] 0.0
        %429 = vst [vmem:[#allocation2 + $0x10] sm:$0xff] 0.0
        %430 = vst [vmem:[#allocation2 + $0x98] sm:$0xff] 0.0
        %431 = vst [vmem:[#allocation2 + $0xa0] sm:$0xff] 0.0
        %432 = vst [vmem:[#allocation2 + $0x18] sm:$0xff] %v405
        %433 = vst [vmem:[#allocation2 + $0x20] sm:$0xff] 0.0
        %434 = vst [vmem:[#allocation2 + $0x28] sm:$0xff] %v406
        %435 = vst [vmem:[#allocation2 + $0x30] sm:$0xff] 0.0
        %436 = vst [vmem:[#allocation2 + $0x38] sm:$0xff] %v407
        %437 = vst [vmem:[#allocation2 + $0x40] sm:$0xff] 0.0
        %438 = vst [vmem:[#allocation2 + $0x48] sm:$0xff] %v408
        %439 = vst [vmem:[#allocation2 + $0x50] sm:$0xff] 0.0
        %440 = vst [vmem:[#allocation2 + $0x58] sm:$0xff] %v409
        %441 = vst [vmem:[#allocation2 + $0x60] sm:$0xff] 0.0
        %442 = vst [vmem:[#allocation2 + $0x68] sm:$0xff] %v410
        %443 = vst [vmem:[#allocation2 + $0x70] sm:$0xff] 0.0
        %444 = vst [vmem:[#allocation2 + $0x78] sm:$0xff] %v411
        %445 = vst [vmem:[#allocation2 + $0x80] sm:$0xff] 0.0
        %446 = vst [vmem:[#allocation2 + $0x88] sm:$0xff] %v412
        %447 = vst [vmem:[#allocation2 + $0x90] sm:$0xff] 0.0
        %v448 = vld [vmem:[#allocation2 + $0x8] sm:$0xff]
        %v449 = vld [vmem:[#allocation2 + $0x10] sm:$0xff]
        %v450 = vld [vmem:[#allocation2 + $0x18] sm:$0xff]
        %v451 = vld [vmem:[#allocation2 + $0x20] sm:$0xff]
        %v452 = vld [vmem:[#allocation2 + $0x28] sm:$0xff]
        %v453 = vld [vmem:[#allocation2 + $0x30] sm:$0xff]
        %v454 = vld [vmem:[#allocation2 + $0x38] sm:$0xff]
        %v455 = vld [vmem:[#allocation2 + $0x40] sm:$0xff]
        %v456 = vld [vmem:[#allocation2 + $0x48] sm:$0xff]
        %v457 = vld [vmem:[#allocation2 + $0x50] sm:$0xff]
        %v458 = vld [vmem:[#allocation2 + $0x58] sm:$0xff]
        %v459 = vld [vmem:[#allocation2 + $0x60] sm:$0xff]
        %v460 = vld [vmem:[#allocation2 + $0x68] sm:$0xff]
        %v461 = vld [vmem:[#allocation2 + $0x70] sm:$0xff]
        %v462 = vld [vmem:[#allocation2 + $0x78] sm:$0xff]
        %v463 = vld [vmem:[#allocation2 + $0x80] sm:$0xff]
        %v464 = vpack.c.bf16 %v449, %v448
        %v465 = vpack.c.bf16 %v451, %v450
        %v466 = vpack.c.bf16 %v453, %v452
        %v467 = vpack.c.bf16 %v455, %v454
        %v468 = vpack.c.bf16 %v457, %v456
        %v469 = vpack.c.bf16 %v459, %v458
        %v470 = vpack.c.bf16 %v461, %v460
        %v471 = vpack.c.bf16 %v463, %v462
        %s472 = scalar_lea.vmem [#allocation4], 64
        %v473 = vld [vmem:[%s472] sm:$0xf]
        %v474 = vld [vmem:[%s472 + $0x4] sm:$0xf]
        %v475 = vld [vmem:[%s472 + $0x8] sm:$0xf]
        %v476 = vld [vmem:[%s472 + $0xc] sm:$0xf]
        %v477 = vld [vmem:[%s472 + $0x10] sm:$0xf]
        %v478 = vld [vmem:[%s472 + $0x14] sm:$0xf]
        %v479 = vld [vmem:[%s472 + $0x18] sm:$0xf]
        %v480 = vld [vmem:[%s472 + $0x1c] sm:$0xf]
        %v481 = vld [vmem:[%s472 + $0x20] sm:$0xf]
        %v482 = vld [vmem:[%s472 + $0x24] sm:$0xf]
        %v483 = vld [vmem:[%s472 + $0x28] sm:$0xf]
        %v484 = vld [vmem:[%s472 + $0x2c] sm:$0xf]
        %v485 = vld [vmem:[%s472 + $0x30] sm:$0xf]
        %v486 = vld [vmem:[%s472 + $0x34] sm:$0xf]
        %v487 = vld [vmem:[%s472 + $0x38] sm:$0xf]
        %v488 = vld [vmem:[%s472 + $0x3c] sm:$0xf]
        %v505 = vunpack.c.l.b16 %v473
        %v506 = vunpack.c.l.b16 %v474
        %v507 = vunpack.c.l.b16 %v475
        %v508 = vunpack.c.l.b16 %v476
        %v509 = vunpack.c.l.b16 %v477
        %v510 = vunpack.c.l.b16 %v478
        %v511 = vunpack.c.l.b16 %v479
        %v512 = vunpack.c.l.b16 %v480
        %v513 = vunpack.c.l.b16 %v481
        %v514 = vunpack.c.l.b16 %v482
        %v515 = vunpack.c.l.b16 %v483
        %v516 = vunpack.c.l.b16 %v484
        %v517 = vunpack.c.l.b16 %v485
        %v518 = vunpack.c.l.b16 %v486
        %v519 = vunpack.c.l.b16 %v487
        %v520 = vunpack.c.l.b16 %v488
        %v521 = vpack.c.b16 %v506, %v505
        %v522 = vpack.c.b16 %v508, %v507
        %v523 = vpack.c.b16 %v510, %v509
        %v524 = vpack.c.b16 %v512, %v511
        %v525 = vpack.c.b16 %v514, %v513
        %v526 = vpack.c.b16 %v516, %v515
        %v527 = vpack.c.b16 %v518, %v517
        %v528 = vpack.c.b16 %v520, %v519
        %537 = vmatprep.subr.bf16.mxu0 0
        %538 = vmatpush1.bf16.msra.mxu0 %v521
        %539 = vmatprep.subr.bf16.mxu0 0
        %540 = vmatpush1.bf16.msra.mxu0 %v522
        %541 = vmatprep.subr.bf16.mxu0 0
        %542 = vmatpush1.bf16.msra.mxu0 %v523
        %543 = vmatprep.subr.bf16.mxu0 0
        %544 = vmatpush1.bf16.msra.mxu0 %v524
        %545 = vmatprep.subr.bf16.mxu0 0
        %546 = vmatpush1.bf16.msra.mxu0 %v525
        %547 = vmatprep.subr.bf16.mxu0 0
        %548 = vmatpush1.bf16.msra.mxu0 %v526
        %549 = vmatprep.subr.bf16.mxu0 0
        %550 = vmatpush1.bf16.msra.mxu0 %v527
        %551 = vmatprep.subr.bf16.mxu0 0
        %552 = vmatpush1.bf16.msra.mxu0 %v528
        %553 = vmatprep.subr.bf16.mxu0 0
        %554 = vmatpush1.bf16.msra.mxu0 0
        %555 = vmatprep.subr.bf16.mxu0 0
        %556 = vmatpush1.bf16.msra.mxu0 0
        %557 = vmatprep.subr.bf16.mxu0 0
        %558 = vmatpush1.bf16.msra.mxu0 0
        %559 = vmatprep.subr.bf16.mxu0 0
        %560 = vmatpush1.bf16.msra.mxu0 0
        %561 = vmatprep.subr.bf16.mxu0 0
        %562 = vmatpush1.bf16.msra.mxu0 0
        %563 = vmatprep.subr.bf16.mxu0 0
        %564 = vmatpush1.bf16.msra.mxu0 0
        %565 = vmatprep.subr.bf16.mxu0 0
        %566 = vmatpush1.bf16.msra.mxu0 0
        %567 = vmatprep.subr.bf16.mxu0 0
        %568 = vmatpush1.bf16.msra.mxu0 0
        %569 = vmatprep.mubr.bf16.mxu0 0
        %570 = vmatmul.mubr.bf16.gmra.mrb[0].mxu0 %v464
        %v571 = vpop.f32.mrb[0].mxu0
        %v572 = vadd.f32 0.0, %v571
        %v573 = vpop.f32.mrb[0].mxu0
        %v574 = vpop.f32.mrb[0].mxu0
        %v575 = vadd.f32 0.0, %v574
        %v576 = vpop.f32.mrb[0].mxu0
        %577 = vmatprep.mubr.bf16.mxu0 0
        %578 = vmatmul.mubr.bf16.gmra.mrb[0].mxu0 %v465
        %v579 = vpop.f32.mrb[0].mxu0
        %v580 = vadd.f32 0.0, %v579
        %v581 = vpop.f32.mrb[0].mxu0
        %v582 = vpop.f32.mrb[0].mxu0
        %v583 = vadd.f32 0.0, %v582
        %v584 = vpop.f32.mrb[0].mxu0
        %585 = vmatprep.mubr.bf16.mxu0 0
        %586 = vmatmul.mubr.bf16.gmra.mrb[0].mxu0 %v466
        %v587 = vpop.f32.mrb[0].mxu0
        %v588 = vadd.f32 0.0, %v587
        %v589 = vpop.f32.mrb[0].mxu0
        %v590 = vpop.f32.mrb[0].mxu0
        %v591 = vadd.f32 0.0, %v590
        %v592 = vpop.f32.mrb[0].mxu0
        %593 = vmatprep.mubr.bf16.mxu0 0
        %594 = vmatmul.mubr.bf16.gmra.mrb[0].mxu0 %v467
        %v595 = vpop.f32.mrb[0].mxu0
        %v596 = vadd.f32 0.0, %v595
        %v597 = vpop.f32.mrb[0].mxu0
        %v598 = vpop.f32.mrb[0].mxu0
        %v599 = vadd.f32 0.0, %v598
        %v600 = vpop.f32.mrb[0].mxu0
        %601 = vmatprep.mubr.bf16.mxu0 0
        %602 = vmatmul.mubr.bf16.gmra.mrb[0].mxu0 %v468
        %v603 = vpop.f32.mrb[0].mxu0
        %v604 = vadd.f32 0.0, %v603
        %v605 = vpop.f32.mrb[0].mxu0
        %v606 = vpop.f32.mrb[0].mxu0
        %v607 = vadd.f32 0.0, %v606
        %v608 = vpop.f32.mrb[0].mxu0
        %609 = vmatprep.mubr.bf16.mxu0 0
        %610 = vmatmul.mubr.bf16.gmra.mrb[0].mxu0 %v469
        %v611 = vpop.f32.mrb[0].mxu0
        %v612 = vadd.f32 0.0, %v611
        %v613 = vpop.f32.mrb[0].mxu0
        %v614 = vpop.f32.mrb[0].mxu0
        %v615 = vadd.f32 0.0, %v614
        %v616 = vpop.f32.mrb[0].mxu0
        %617 = vmatprep.mubr.bf16.mxu0 0
        %618 = vmatmul.mubr.bf16.gmra.mrb[0].mxu0 %v470
        %v619 = vpop.f32.mrb[0].mxu0
        %v620 = vadd.f32 0.0, %v619
        %v621 = vpop.f32.mrb[0].mxu0
        %v622 = vpop.f32.mrb[0].mxu0
        %v623 = vadd.f32 0.0, %v622
        %v624 = vpop.f32.mrb[0].mxu0
        %625 = vmatprep.mubr.bf16.mxu0 0
        %626 = vmatmul.mubr.bf16.gmra.mrb[0].mxu0 %v471
        %v627 = vpop.f32.mrb[0].mxu0
        %v628 = vadd.f32 0.0, %v627
        %v629 = vpop.f32.mrb[0].mxu0
        %v630 = vpop.f32.mrb[0].mxu0
        %v631 = vadd.f32 0.0, %v630
        %v632 = vpop.f32.mrb[0].mxu0
        %633 = vdwg.mxu0
        %v634 = vrot.slane %v448, 7
        %v635 = vrot.slane %v449, 7
        %v636 = vrot.slane %v450, 7
        %v637 = vrot.slane %v451, 7
        %v638 = vrot.slane %v452, 7
        %v639 = vrot.slane %v453, 7
        %v640 = vrot.slane %v454, 7
        %v641 = vrot.slane %v455, 7
        %v642 = vrot.slane %v456, 7
        %v643 = vrot.slane %v457, 7
        %v644 = vrot.slane %v458, 7
        %v645 = vrot.slane %v459, 7
        %v646 = vrot.slane %v460, 7
        %v647 = vrot.slane %v461, 7
        %v648 = vrot.slane %v462, 7
        %v649 = vrot.slane %v463, 7
        %v650 = vlaneseq
        %v651 = vshrl.u32 %v650, 7
        %vm652 = vcmp.lt.s32.totalorder %v651, 1
        %v653 = vsel %vm652, %v648, %v649
        %v654 = vsel %vm652, %v647, %v648
        %v655 = vsel %vm652, %v646, %v647
        %v656 = vsel %vm652, %v645, %v646
        %v657 = vsel %vm652, %v644, %v645
        %v658 = vsel %vm652, %v643, %v644
        %v659 = vsel %vm652, %v642, %v643
        %v660 = vsel %vm652, %v641, %v642
        %v661 = vsel %vm652, %v640, %v641
        %v662 = vsel %vm652, %v639, %v640
        %v663 = vsel %vm652, %v638, %v639
        %v664 = vsel %vm652, %v637, %v638
        %v665 = vsel %vm652, %v636, %v637
        %v666 = vsel %vm652, %v635, %v636
        %v667 = vsel %vm652, %v634, %v635
        %v668 = vsel %vm652, %v649, %v634
        %v669 = vpack.c.bf16 %v667, %v668
        %v670 = vpack.c.bf16 %v665, %v666
        %v671 = vpack.c.bf16 %v663, %v664
        %v672 = vpack.c.bf16 %v661, %v662
        %v673 = vpack.c.bf16 %v659, %v660
        %v674 = vpack.c.bf16 %v657, %v658
        %v675 = vpack.c.bf16 %v655, %v656
        %v676 = vpack.c.bf16 %v653, %v654
        %v677 = vld [vmem:[#allocation4] sm:$0xf]
        %v678 = vld [vmem:[#allocation4 + $0x4] sm:$0xf]
        %v679 = vld [vmem:[#allocation4 + $0x8] sm:$0xf]
        %v680 = vld [vmem:[#allocation4 + $0xc] sm:$0xf]
        %v681 = vld [vmem:[#allocation4 + $0x10] sm:$0xf]
        %v682 = vld [vmem:[#allocation4 + $0x14] sm:$0xf]
        %v683 = vld [vmem:[#allocation4 + $0x18] sm:$0xf]
        %v684 = vld [vmem:[#allocation4 + $0x1c] sm:$0xf]
        %v685 = vld [vmem:[#allocation4 + $0x20] sm:$0xf]
        %v686 = vld [vmem:[#allocation4 + $0x24] sm:$0xf]
        %v687 = vld [vmem:[#allocation4 + $0x28] sm:$0xf]
        %v688 = vld [vmem:[#allocation4 + $0x2c] sm:$0xf]
        %v689 = vld [vmem:[#allocation4 + $0x30] sm:$0xf]
        %v690 = vld [vmem:[#allocation4 + $0x34] sm:$0xf]
        %v691 = vld [vmem:[#allocation4 + $0x38] sm:$0xf]
        %v692 = vld [vmem:[#allocation4 + $0x3c] sm:$0xf]
        %v693 = vrot.slane %v448, 1
        %v694 = vrot.slane %v449, 1
        %v695 = vrot.slane %v450, 1
        %v696 = vrot.slane %v451, 1
        %v697 = vrot.slane %v452, 1
        %v698 = vrot.slane %v453, 1
        %v699 = vrot.slane %v454, 1
        %v700 = vrot.slane %v455, 1
        %v701 = vrot.slane %v456, 1
        %v702 = vrot.slane %v457, 1
        %v703 = vrot.slane %v458, 1
        %v704 = vrot.slane %v459, 1
        %v705 = vrot.slane %v460, 1
        %v706 = vrot.slane %v461, 1
        %v707 = vrot.slane %v462, 1
        %v708 = vrot.slane %v463, 1
        %vm709 = vcmp.lt.s32.totalorder %v651, 7
        %v710 = vsel %vm709, %v707, %v708
        %v711 = vsel %vm709, %v706, %v707
        %v712 = vsel %vm709, %v705, %v706
        %v713 = vsel %vm709, %v704, %v705
        %v714 = vsel %vm709, %v703, %v704
        %v715 = vsel %vm709, %v702, %v703
        %v716 = vsel %vm709, %v701, %v702
        %v717 = vsel %vm709, %v700, %v701
        %v718 = vsel %vm709, %v699, %v700
        %v719 = vsel %vm709, %v698, %v699
        %v720 = vsel %vm709, %v697, %v698
        %v721 = vsel %vm709, %v696, %v697
        %v722 = vsel %vm709, %v695, %v696
        %v723 = vsel %vm709, %v694, %v695
        %v724 = vsel %vm709, %v693, %v694
        %v725 = vsel %vm709, %v708, %v693
        %v726 = vpack.c.bf16 %v723, %v724
        %v727 = vpack.c.bf16 %v721, %v722
        %v728 = vpack.c.bf16 %v719, %v720
        %v729 = vpack.c.bf16 %v717, %v718
        %v730 = vpack.c.bf16 %v715, %v716
        %v731 = vpack.c.bf16 %v713, %v714
        %v732 = vpack.c.bf16 %v711, %v712
        %v733 = vpack.c.bf16 %v725, %v710
        %s734 = scalar_lea.vmem [#allocation4], 128
        %v735 = vld [vmem:[%s734] sm:$0xf]
        %v736 = vld [vmem:[%s734 + $0x4] sm:$0xf]
        %v737 = vld [vmem:[%s734 + $0x8] sm:$0xf]
        %v738 = vld [vmem:[%s734 + $0xc] sm:$0xf]
        %v739 = vld [vmem:[%s734 + $0x10] sm:$0xf]
        %v740 = vld [vmem:[%s734 + $0x14] sm:$0xf]
        %v741 = vld [vmem:[%s734 + $0x18] sm:$0xf]
        %v742 = vld [vmem:[%s734 + $0x1c] sm:$0xf]
        %v743 = vld [vmem:[%s734 + $0x20] sm:$0xf]
        %v744 = vld [vmem:[%s734 + $0x24] sm:$0xf]
        %v745 = vld [vmem:[%s734 + $0x28] sm:$0xf]
        %v746 = vld [vmem:[%s734 + $0x2c] sm:$0xf]
        %v747 = vld [vmem:[%s734 + $0x30] sm:$0xf]
        %v748 = vld [vmem:[%s734 + $0x34] sm:$0xf]
        %v749 = vld [vmem:[%s734 + $0x38] sm:$0xf]
        %v750 = vld [vmem:[%s734 + $0x3c] sm:$0xf]
        %v767 = vunpack.c.l.b16 %v735
        %v768 = vunpack.c.l.b16 %v736
        %v769 = vunpack.c.l.b16 %v737
        %v770 = vunpack.c.l.b16 %v738
        %v771 = vunpack.c.l.b16 %v739
        %v772 = vunpack.c.l.b16 %v740
        %v773 = vunpack.c.l.b16 %v741
        %v774 = vunpack.c.l.b16 %v742
        %v775 = vunpack.c.l.b16 %v743
        %v776 = vunpack.c.l.b16 %v744
        %v777 = vunpack.c.l.b16 %v745
        %v778 = vunpack.c.l.b16 %v746
        %v779 = vunpack.c.l.b16 %v747
        %v780 = vunpack.c.l.b16 %v748
        %v781 = vunpack.c.l.b16 %v749
        %v782 = vunpack.c.l.b16 %v750
        %v783 = vpack.c.b16 %v768, %v767
        %v784 = vpack.c.b16 %v770, %v769
        %v785 = vpack.c.b16 %v772, %v771
        %v786 = vpack.c.b16 %v774, %v773
        %v787 = vpack.c.b16 %v776, %v775
        %v788 = vpack.c.b16 %v778, %v777
        %v789 = vpack.c.b16 %v780, %v779
        %v790 = vpack.c.b16 %v782, %v781
        %799 = vmatprep.subr.bf16.mxu0 0
        %800 = vmatpush1.bf16.msra.mxu0 %v783
        %801 = vmatprep.subr.bf16.mxu0 0
        %802 = vmatpush1.bf16.msra.mxu0 %v784
        %803 = vmatprep.subr.bf16.mxu0 0
        %804 = vmatpush1.bf16.msra.mxu0 %v785
        %805 = vmatprep.subr.bf16.mxu0 0
        %806 = vmatpush1.bf16.msra.mxu0 %v786
        %807 = vmatprep.subr.bf16.mxu0 0
        %808 = vmatpush1.bf16.msra.mxu0 %v787
        %809 = vmatprep.subr.bf16.mxu0 0
        %810 = vmatpush1.bf16.msra.mxu0 %v788
        %811 = vmatprep.subr.bf16.mxu0 0
        %812 = vmatpush1.bf16.msra.mxu0 %v789
        %813 = vmatprep.subr.bf16.mxu0 0
        %814 = vmatpush1.bf16.msra.mxu0 %v790
        %815 = vmatprep.subr.bf16.mxu0 0
        %816 = vmatpush1.bf16.msra.mxu0 0
        %817 = vmatprep.subr.bf16.mxu0 0
        %818 = vmatpush1.bf16.msra.mxu0 0
        %819 = vmatprep.subr.bf16.mxu0 0
        %820 = vmatpush1.bf16.msra.mxu0 0
        %821 = vmatprep.subr.bf16.mxu0 0
        %822 = vmatpush1.bf16.msra.mxu0 0
        %823 = vmatprep.subr.bf16.mxu0 0
        %824 = vmatpush1.bf16.msra.mxu0 0
        %825 = vmatprep.subr.bf16.mxu0 0
        %826 = vmatpush1.bf16.msra.mxu0 0
        %827 = vmatprep.subr.bf16.mxu0 0
        %828 = vmatpush1.bf16.msra.mxu0 0
        %829 = vmatprep.subr.bf16.mxu0 0
        %830 = vmatpush1.bf16.msra.mxu0 0
        %831 = vmatprep.mubr.bf16.mxu0 0
        %832 = vmatmul.mubr.bf16.gmra.mrb[0].mxu0 %v726
        %v833 = vpop.f32.mrb[0].mxu0
        %v834 = vadd.f32 0.0, %v833
        %v835 = vpop.f32.mrb[0].mxu0
        %v836 = vpop.f32.mrb[0].mxu0
        %v837 = vadd.f32 0.0, %v836
        %v838 = vpop.f32.mrb[0].mxu0
        %839 = vmatprep.mubr.bf16.mxu0 0
        %840 = vmatmul.mubr.bf16.gmra.mrb[0].mxu0 %v727
        %v841 = vpop.f32.mrb[0].mxu0
        %v842 = vadd.f32 0.0, %v841
        %v843 = vpop.f32.mrb[0].mxu0
        %v844 = vpop.f32.mrb[0].mxu0
        %v845 = vadd.f32 0.0, %v844
        %v846 = vpop.f32.mrb[0].mxu0
        %847 = vmatprep.mubr.bf16.mxu0 0
        %848 = vmatmul.mubr.bf16.gmra.mrb[0].mxu0 %v728
        %v849 = vpop.f32.mrb[0].mxu0
        %v850 = vadd.f32 0.0, %v849
        %v851 = vpop.f32.mrb[0].mxu0
        %v852 = vpop.f32.mrb[0].mxu0
        %v853 = vadd.f32 0.0, %v852
        %v854 = vpop.f32.mrb[0].mxu0
        %855 = vmatprep.mubr.bf16.mxu0 0
        %856 = vmatmul.mubr.bf16.gmra.mrb[0].mxu0 %v729
        %v857 = vpop.f32.mrb[0].mxu0
        %v858 = vadd.f32 0.0, %v857
        %v859 = vpop.f32.mrb[0].mxu0
        %v860 = vpop.f32.mrb[0].mxu0
        %v861 = vadd.f32 0.0, %v860
        %v862 = vpop.f32.mrb[0].mxu0
        %863 = vmatprep.mubr.bf16.mxu0 0
        %864 = vmatmul.mubr.bf16.gmra.mrb[0].mxu0 %v730
        %v865 = vpop.f32.mrb[0].mxu0
        %v866 = vadd.f32 0.0, %v865
        %v867 = vpop.f32.mrb[0].mxu0
        %v868 = vpop.f32.mrb[0].mxu0
        %v869 = vadd.f32 0.0, %v868
        %v870 = vpop.f32.mrb[0].mxu0
        %871 = vmatprep.mubr.bf16.mxu0 0
        %872 = vmatmul.mubr.bf16.gmra.mrb[0].mxu0 %v731
        %v873 = vpop.f32.mrb[0].mxu0
        %v874 = vadd.f32 0.0, %v873
        %v875 = vpop.f32.mrb[0].mxu0
        %v876 = vpop.f32.mrb[0].mxu0
        %v877 = vadd.f32 0.0, %v876
        %v878 = vpop.f32.mrb[0].mxu0
        %879 = vmatprep.mubr.bf16.mxu0 0
        %880 = vmatmul.mubr.bf16.gmra.mrb[0].mxu0 %v732
        %v881 = vpop.f32.mrb[0].mxu0
        %v882 = vadd.f32 0.0, %v881
        %v883 = vpop.f32.mrb[0].mxu0
        %v884 = vpop.f32.mrb[0].mxu0
        %v885 = vadd.f32 0.0, %v884
        %v886 = vpop.f32.mrb[0].mxu0
        %887 = vmatprep.mubr.bf16.mxu0 0
        %888 = vmatmul.mubr.bf16.gmra.mrb[0].mxu0 %v733
        %v889 = vpop.f32.mrb[0].mxu0
        %v890 = vadd.f32 0.0, %v889
        %v891 = vpop.f32.mrb[0].mxu0
        %v892 = vpop.f32.mrb[0].mxu0
        %v893 = vadd.f32 0.0, %v892
        %v894 = vpop.f32.mrb[0].mxu0
        %895 = vdwg.mxu0
        %v912 = vunpack.c.l.b16 %v677
        %v913 = vunpack.c.l.b16 %v678
        %v914 = vunpack.c.l.b16 %v679
        %v915 = vunpack.c.l.b16 %v680
        %v916 = vunpack.c.l.b16 %v681
        %v917 = vunpack.c.l.b16 %v682
        %v918 = vunpack.c.l.b16 %v683
        %v919 = vunpack.c.l.b16 %v684
        %v920 = vunpack.c.l.b16 %v685
        %v921 = vunpack.c.l.b16 %v686
        %v922 = vunpack.c.l.b16 %v687
        %v923 = vunpack.c.l.b16 %v688
        %v924 = vunpack.c.l.b16 %v689
        %v925 = vunpack.c.l.b16 %v690
        %v926 = vunpack.c.l.b16 %v691
        %v927 = vunpack.c.l.b16 %v692
        %v928 = vpack.c.b16 %v913, %v912
        %v929 = vpack.c.b16 %v915, %v914
        %v930 = vpack.c.b16 %v917, %v916
        %v931 = vpack.c.b16 %v919, %v918
        %v932 = vpack.c.b16 %v921, %v920
        %v933 = vpack.c.b16 %v923, %v922
        %v934 = vpack.c.b16 %v925, %v924
        %v935 = vpack.c.b16 %v927, %v926
        %944 = vmatprep.subr.bf16.mxu0 0
        %945 = vmatpush1.bf16.msra.mxu0 %v928
        %946 = vmatprep.subr.bf16.mxu0 0
        %947 = vmatpush1.bf16.msra.mxu0 %v929
        %948 = vmatprep.subr.bf16.mxu0 0
        %949 = vmatpush1.bf16.msra.mxu0 %v930
        %950 = vmatprep.subr.bf16.mxu0 0
        %951 = vmatpush1.bf16.msra.mxu0 %v931
        %952 = vmatprep.subr.bf16.mxu0 0
        %953 = vmatpush1.bf16.msra.mxu0 %v932
        %954 = vmatprep.subr.bf16.mxu0 0
        %955 = vmatpush1.bf16.msra.mxu0 %v933
        %956 = vmatprep.subr.bf16.mxu0 0
        %957 = vmatpush1.bf16.msra.mxu0 %v934
        %958 = vmatprep.subr.bf16.mxu0 0
        %959 = vmatpush1.bf16.msra.mxu0 %v935
        %960 = vmatprep.subr.bf16.mxu0 0
        %961 = vmatpush1.bf16.msra.mxu0 0
        %962 = vmatprep.subr.bf16.mxu0 0
        %963 = vmatpush1.bf16.msra.mxu0 0
        %964 = vmatprep.subr.bf16.mxu0 0
        %965 = vmatpush1.bf16.msra.mxu0 0
        %966 = vmatprep.subr.bf16.mxu0 0
        %967 = vmatpush1.bf16.msra.mxu0 0
        %968 = vmatprep.subr.bf16.mxu0 0
        %969 = vmatpush1.bf16.msra.mxu0 0
        %970 = vmatprep.subr.bf16.mxu0 0
        %971 = vmatpush1.bf16.msra.mxu0 0
        %972 = vmatprep.subr.bf16.mxu0 0
        %973 = vmatpush1.bf16.msra.mxu0 0
        %974 = vmatprep.subr.bf16.mxu0 0
        %975 = vmatpush1.bf16.msra.mxu0 0
        %976 = vmatprep.mubr.bf16.mxu0 0
        %977 = vmatmul.mubr.bf16.gmra.mrb[0].mxu0 %v669
        %v978 = vpop.f32.mrb[0].mxu0
        %v979 = vadd.f32 %v572, %v978
        %v980 = vpop.f32.mrb[0].mxu0
        %v981 = vpop.f32.mrb[0].mxu0
        %v982 = vadd.f32 %v575, %v981
        %v983 = vpop.f32.mrb[0].mxu0
        %984 = vmatprep.mubr.bf16.mxu0 0
        %985 = vmatmul.mubr.bf16.gmra.mrb[0].mxu0 %v670
        %v986 = vpop.f32.mrb[0].mxu0
        %v987 = vadd.f32 %v580, %v986
        %v988 = vpop.f32.mrb[0].mxu0
        %v989 = vpop.f32.mrb[0].mxu0
        %v990 = vadd.f32 %v583, %v989
        %v991 = vpop.f32.mrb[0].mxu0
        %992 = vmatprep.mubr.bf16.mxu0 0
        %993 = vmatmul.mubr.bf16.gmra.mrb[0].mxu0 %v671
        %v994 = vpop.f32.mrb[0].mxu0
        %v995 = vadd.f32 %v588, %v994
        %v996 = vpop.f32.mrb[0].mxu0
        %v997 = vpop.f32.mrb[0].mxu0
        %v998 = vadd.f32 %v591, %v997
        %v999 = vpop.f32.mrb[0].mxu0
        %1000 = vmatprep.mubr.bf16.mxu0 0
        %1001 = vmatmul.mubr.bf16.gmra.mrb[0].mxu0 %v672
        %v1002 = vpop.f32.mrb[0].mxu0
        %v1003 = vadd.f32 %v596, %v1002
        %v1004 = vpop.f32.mrb[0].mxu0
        %v1005 = vpop.f32.mrb[0].mxu0
        %v1006 = vadd.f32 %v599, %v1005
        %v1007 = vpop.f32.mrb[0].mxu0
        %1008 = vmatprep.mubr.bf16.mxu0 0
        %1009 = vmatmul.mubr.bf16.gmra.mrb[0].mxu0 %v673
        %v1010 = vpop.f32.mrb[0].mxu0
        %v1011 = vadd.f32 %v604, %v1010
        %v1012 = vpop.f32.mrb[0].mxu0
        %v1013 = vpop.f32.mrb[0].mxu0
        %v1014 = vadd.f32 %v607, %v1013
        %v1015 = vpop.f32.mrb[0].mxu0
        %1016 = vmatprep.mubr.bf16.mxu0 0
        %1017 = vmatmul.mubr.bf16.gmra.mrb[0].mxu0 %v674
        %v1018 = vpop.f32.mrb[0].mxu0
        %v1019 = vadd.f32 %v612, %v1018
        %v1020 = vpop.f32.mrb[0].mxu0
        %v1021 = vpop.f32.mrb[0].mxu0
        %v1022 = vadd.f32 %v615, %v1021
        %v1023 = vpop.f32.mrb[0].mxu0
        %1024 = vmatprep.mubr.bf16.mxu0 0
        %1025 = vmatmul.mubr.bf16.gmra.mrb[0].mxu0 %v675
        %v1026 = vpop.f32.mrb[0].mxu0
        %v1027 = vadd.f32 %v620, %v1026
        %v1028 = vpop.f32.mrb[0].mxu0
        %v1029 = vpop.f32.mrb[0].mxu0
        %v1030 = vadd.f32 %v623, %v1029
        %v1031 = vpop.f32.mrb[0].mxu0
        %1032 = vmatprep.mubr.bf16.mxu0 0
        %1033 = vmatmul.mubr.bf16.gmra.mrb[0].mxu0 %v676
        %v1034 = vpop.f32.mrb[0].mxu0
        %v1035 = vadd.f32 %v628, %v1034
        %v1036 = vpop.f32.mrb[0].mxu0
        %v1037 = vpop.f32.mrb[0].mxu0
        %v1038 = vadd.f32 %v631, %v1037
        %v1039 = vpop.f32.mrb[0].mxu0
        %1040 = vdwg.mxu0
        %v1041 = vadd.f32 %v979, %v834
        %v1042 = vadd.f32 %v982, %v837
        %v1043 = vadd.f32 %v987, %v842
        %v1044 = vadd.f32 %v990, %v845
        %v1045 = vadd.f32 %v995, %v850
        %v1046 = vadd.f32 %v998, %v853
        %v1047 = vadd.f32 %v1003, %v858
        %v1048 = vadd.f32 %v1006, %v861
        %v1049 = vadd.f32 %v1011, %v866
        %v1050 = vadd.f32 %v1014, %v869
        %v1051 = vadd.f32 %v1019, %v874
        %v1052 = vadd.f32 %v1022, %v877
        %v1053 = vadd.f32 %v1027, %v882
        %v1054 = vadd.f32 %v1030, %v885
        %v1055 = vadd.f32 %v1035, %v890
        %v1056 = vadd.f32 %v1038, %v893
        %1057 = vst [vmem:[#allocation3] sm:$0xff] %v1041
        %1058 = vst [vmem:[#allocation3 + $0x8] sm:$0xff] %v1042
        %1059 = vst [vmem:[#allocation3 + $0x10] sm:$0xff] %v1043
        %1060 = vst [vmem:[#allocation3 + $0x18] sm:$0xff] %v1044
        %1061 = vst [vmem:[#allocation3 + $0x20] sm:$0xff] %v1045
        %1062 = vst [vmem:[#allocation3 + $0x28] sm:$0xff] %v1046
        %1063 = vst [vmem:[#allocation3 + $0x30] sm:$0xff] %v1047
        %1064 = vst [vmem:[#allocation3 + $0x38] sm:$0xff] %v1048
        %1065 = vst [vmem:[#allocation3 + $0x40] sm:$0xff] %v1049
        %1066 = vst [vmem:[#allocation3 + $0x48] sm:$0xff] %v1050
        %1067 = vst [vmem:[#allocation3 + $0x50] sm:$0xff] %v1051
        %1068 = vst [vmem:[#allocation3 + $0x58] sm:$0xff] %v1052
        %1069 = vst [vmem:[#allocation3 + $0x60] sm:$0xff] %v1053
        %1070 = vst [vmem:[#allocation3 + $0x68] sm:$0xff] %v1054
        %1071 = vst [vmem:[#allocation3 + $0x70] sm:$0xff] %v1055
        %1072 = vst [vmem:[#allocation3 + $0x78] sm:$0xff] %v1056
        %v1073 = vld [vmem:[#allocation2 + $0x18] sm:$0xff]
        %v1074 = vld [vmem:[#allocation2 + $0x20] sm:$0xff]
        %v1075 = vld [vmem:[#allocation2 + $0x28] sm:$0xff]
        %v1076 = vld [vmem:[#allocation2 + $0x30] sm:$0xff]
        %v1077 = vld [vmem:[#allocation2 + $0x38] sm:$0xff]
        %v1078 = vld [vmem:[#allocation2 + $0x40] sm:$0xff]
        %v1079 = vld [vmem:[#allocation2 + $0x48] sm:$0xff]
        %v1080 = vld [vmem:[#allocation2 + $0x50] sm:$0xff]
        %v1081 = vld [vmem:[#allocation2 + $0x58] sm:$0xff]
        %v1082 = vld [vmem:[#allocation2 + $0x60] sm:$0xff]
        %v1083 = vld [vmem:[#allocation2 + $0x68] sm:$0xff]
        %v1084 = vld [vmem:[#allocation2 + $0x70] sm:$0xff]
        %v1085 = vld [vmem:[#allocation2 + $0x78] sm:$0xff]
        %v1086 = vld [vmem:[#allocation2 + $0x80] sm:$0xff]
        %v1087 = vld [vmem:[#allocation2 + $0x88] sm:$0xff]
        %v1088 = vld [vmem:[#allocation2 + $0x90] sm:$0xff]
        %v1089 = vpack.c.bf16 %v1074, %v1073
        %v1090 = vpack.c.bf16 %v1076, %v1075
        %v1091 = vpack.c.bf16 %v1078, %v1077
        %v1092 = vpack.c.bf16 %v1080, %v1079
        %v1093 = vpack.c.bf16 %v1082, %v1081
        %v1094 = vpack.c.bf16 %v1084, %v1083
        %v1095 = vpack.c.bf16 %v1086, %v1085
        %v1096 = vpack.c.bf16 %v1088, %v1087
        %s1097 = scalar_lea.vmem [#allocation4], 256
        %v1098 = vld [vmem:[%s1097] sm:$0xf]
        %v1099 = vld [vmem:[%s1097 + $0x4] sm:$0xf]
        %v1100 = vld [vmem:[%s1097 + $0x8] sm:$0xf]
        %v1101 = vld [vmem:[%s1097 + $0xc] sm:$0xf]
        %v1102 = vld [vmem:[%s1097 + $0x10] sm:$0xf]
        %v1103 = vld [vmem:[%s1097 + $0x14] sm:$0xf]
        %v1104 = vld [vmem:[%s1097 + $0x18] sm:$0xf]
        %v1105 = vld [vmem:[%s1097 + $0x1c] sm:$0xf]
        %v1106 = vld [vmem:[%s1097 + $0x20] sm:$0xf]
        %v1107 = vld [vmem:[%s1097 + $0x24] sm:$0xf]
        %v1108 = vld [vmem:[%s1097 + $0x28] sm:$0xf]
        %v1109 = vld [vmem:[%s1097 + $0x2c] sm:$0xf]
        %v1110 = vld [vmem:[%s1097 + $0x30] sm:$0xf]
        %v1111 = vld [vmem:[%s1097 + $0x34] sm:$0xf]
        %v1112 = vld [vmem:[%s1097 + $0x38] sm:$0xf]
        %v1113 = vld [vmem:[%s1097 + $0x3c] sm:$0xf]
        %v1130 = vunpack.c.l.b16 %v1098
        %v1131 = vunpack.c.l.b16 %v1099
        %v1132 = vunpack.c.l.b16 %v1100
        %v1133 = vunpack.c.l.b16 %v1101
        %v1134 = vunpack.c.l.b16 %v1102
        %v1135 = vunpack.c.l.b16 %v1103
        %v1136 = vunpack.c.l.b16 %v1104
        %v1137 = vunpack.c.l.b16 %v1105
        %v1138 = vunpack.c.l.b16 %v1106
        %v1139 = vunpack.c.l.b16 %v1107
        %v1140 = vunpack.c.l.b16 %v1108
        %v1141 = vunpack.c.l.b16 %v1109
        %v1142 = vunpack.c.l.b16 %v1110
        %v1143 = vunpack.c.l.b16 %v1111
        %v1144 = vunpack.c.l.b16 %v1112
        %v1145 = vunpack.c.l.b16 %v1113
        %v1146 = vpack.c.b16 %v1131, %v1130
        %v1147 = vpack.c.b16 %v1133, %v1132
        %v1148 = vpack.c.b16 %v1135, %v1134
        %v1149 = vpack.c.b16 %v1137, %v1136
        %v1150 = vpack.c.b16 %v1139, %v1138
        %v1151 = vpack.c.b16 %v1141, %v1140
        %v1152 = vpack.c.b16 %v1143, %v1142
        %v1153 = vpack.c.b16 %v1145, %v1144
        %1162 = vmatprep.subr.bf16.mxu0 0
        %1163 = vmatpush1.bf16.msra.mxu0 %v1146
        %1164 = vmatprep.subr.bf16.mxu0 0
        %1165 = vmatpush1.bf16.msra.mxu0 %v1147
        %1166 = vmatprep.subr.bf16.mxu0 0
        %1167 = vmatpush1.bf16.msra.mxu0 %v1148
        %1168 = vmatprep.subr.bf16.mxu0 0
        %1169 = vmatpush1.bf16.msra.mxu0 %v1149
        %1170 = vmatprep.subr.bf16.mxu0 0
        %1171 = vmatpush1.bf16.msra.mxu0 %v1150
        %1172 = vmatprep.subr.bf16.mxu0 0
        %1173 = vmatpush1.bf16.msra.mxu0 %v1151
        %1174 = vmatprep.subr.bf16.mxu0 0
        %1175 = vmatpush1.bf16.msra.mxu0 %v1152
        %1176 = vmatprep.subr.bf16.mxu0 0
        %1177 = vmatpush1.bf16.msra.mxu0 %v1153
        %1178 = vmatprep.subr.bf16.mxu0 0
        %1179 = vmatpush1.bf16.msra.mxu0 0
        %1180 = vmatprep.subr.bf16.mxu0 0
        %1181 = vmatpush1.bf16.msra.mxu0 0
        %1182 = vmatprep.subr.bf16.mxu0 0
        %1183 = vmatpush1.bf16.msra.mxu0 0
        %1184 = vmatprep.subr.bf16.mxu0 0
        %1185 = vmatpush1.bf16.msra.mxu0 0
        %1186 = vmatprep.subr.bf16.mxu0 0
        %1187 = vmatpush1.bf16.msra.mxu0 0
        %1188 = vmatprep.subr.bf16.mxu0 0
        %1189 = vmatpush1.bf16.msra.mxu0 0
        %1190 = vmatprep.subr.bf16.mxu0 0
        %1191 = vmatpush1.bf16.msra.mxu0 0
        %1192 = vmatprep.subr.bf16.mxu0 0
        %1193 = vmatpush1.bf16.msra.mxu0 0
        %1194 = vmatprep.mubr.bf16.mxu0 0
        %1195 = vmatmul.mubr.bf16.gmra.mrb[0].mxu0 %v1089
        %v1196 = vpop.f32.mrb[0].mxu0
        %v1197 = vadd.f32 0.0, %v1196
        %v1198 = vpop.f32.mrb[0].mxu0
        %v1199 = vpop.f32.mrb[0].mxu0
        %v1200 = vadd.f32 0.0, %v1199
        %v1201 = vpop.f32.mrb[0].mxu0
        %1202 = vmatprep.mubr.bf16.mxu0 0
        %1203 = vmatmul.mubr.bf16.gmra.mrb[0].mxu0 %v1090
        %v1204 = vpop.f32.mrb[0].mxu0
        %v1205 = vadd.f32 0.0, %v1204
        %v1206 = vpop.f32.mrb[0].mxu0
        %v1207 = vpop.f32.mrb[0].mxu0
        %v1208 = vadd.f32 0.0, %v1207
        %v1209 = vpop.f32.mrb[0].mxu0
        %1210 = vmatprep.mubr.bf16.mxu0 0
        %1211 = vmatmul.mubr.bf16.gmra.mrb[0].mxu0 %v1091
        %v1212 = vpop.f32.mrb[0].mxu0
        %v1213 = vadd.f32 0.0, %v1212
        %v1214 = vpop.f32.mrb[0].mxu0
        %v1215 = vpop.f32.mrb[0].mxu0
        %v1216 = vadd.f32 0.0, %v1215
        %v1217 = vpop.f32.mrb[0].mxu0
        %1218 = vmatprep.mubr.bf16.mxu0 0
        %1219 = vmatmul.mubr.bf16.gmra.mrb[0].mxu0 %v1092
        %v1220 = vpop.f32.mrb[0].mxu0
        %v1221 = vadd.f32 0.0, %v1220
        %v1222 = vpop.f32.mrb[0].mxu0
        %v1223 = vpop.f32.mrb[0].mxu0
        %v1224 = vadd.f32 0.0, %v1223
        %v1225 = vpop.f32.mrb[0].mxu0
        %1226 = vmatprep.mubr.bf16.mxu0 0
        %1227 = vmatmul.mubr.bf16.gmra.mrb[0].mxu0 %v1093
        %v1228 = vpop.f32.mrb[0].mxu0
        %v1229 = vadd.f32 0.0, %v1228
        %v1230 = vpop.f32.mrb[0].mxu0
        %v1231 = vpop.f32.mrb[0].mxu0
        %v1232 = vadd.f32 0.0, %v1231
        %v1233 = vpop.f32.mrb[0].mxu0
        %1234 = vmatprep.mubr.bf16.mxu0 0
        %1235 = vmatmul.mubr.bf16.gmra.mrb[0].mxu0 %v1094
        %v1236 = vpop.f32.mrb[0].mxu0
        %v1237 = vadd.f32 0.0, %v1236
        %v1238 = vpop.f32.mrb[0].mxu0
        %v1239 = vpop.f32.mrb[0].mxu0
        %v1240 = vadd.f32 0.0, %v1239
        %v1241 = vpop.f32.mrb[0].mxu0
        %1242 = vmatprep.mubr.bf16.mxu0 0
        %1243 = vmatmul.mubr.bf16.gmra.mrb[0].mxu0 %v1095
        %v1244 = vpop.f32.mrb[0].mxu0
        %v1245 = vadd.f32 0.0, %v1244
        %v1246 = vpop.f32.mrb[0].mxu0
        %v1247 = vpop.f32.mrb[0].mxu0
        %v1248 = vadd.f32 0.0, %v1247
        %v1249 = vpop.f32.mrb[0].mxu0
        %1250 = vmatprep.mubr.bf16.mxu0 0
        %1251 = vmatmul.mubr.bf16.gmra.mrb[0].mxu0 %v1096
        %v1252 = vpop.f32.mrb[0].mxu0
        %v1253 = vadd.f32 0.0, %v1252
        %v1254 = vpop.f32.mrb[0].mxu0
        %v1255 = vpop.f32.mrb[0].mxu0
        %v1256 = vadd.f32 0.0, %v1255
        %v1257 = vpop.f32.mrb[0].mxu0
        %1258 = vdwg.mxu0
        %v1259 = vrot.slane %v1073, 7
        %v1260 = vrot.slane %v1074, 7
        %v1261 = vrot.slane %v1075, 7
        %v1262 = vrot.slane %v1076, 7
        %v1263 = vrot.slane %v1077, 7
        %v1264 = vrot.slane %v1078, 7
        %v1265 = vrot.slane %v1079, 7
        %v1266 = vrot.slane %v1080, 7
        %v1267 = vrot.slane %v1081, 7
        %v1268 = vrot.slane %v1082, 7
        %v1269 = vrot.slane %v1083, 7
        %v1270 = vrot.slane %v1084, 7
        %v1271 = vrot.slane %v1085, 7
        %v1272 = vrot.slane %v1086, 7
        %v1273 = vrot.slane %v1087, 7
        %v1274 = vrot.slane %v1088, 7
        %v1275 = vsel %vm652, %v1273, %v1274
        %v1276 = vsel %vm652, %v1272, %v1273
        %v1277 = vsel %vm652, %v1271, %v1272
        %v1278 = vsel %vm652, %v1270, %v1271
        %v1279 = vsel %vm652, %v1269, %v1270
        %v1280 = vsel %vm652, %v1268, %v1269
        %v1281 = vsel %vm652, %v1267, %v1268
        %v1282 = vsel %vm652, %v1266, %v1267
        %v1283 = vsel %vm652, %v1265, %v1266
        %v1284 = vsel %vm652, %v1264, %v1265
        %v1285 = vsel %vm652, %v1263, %v1264
        %v1286 = vsel %vm652, %v1262, %v1263
        %v1287 = vsel %vm652, %v1261, %v1262
        %v1288 = vsel %vm652, %v1260, %v1261
        %v1289 = vsel %vm652, %v1259, %v1260
        %v1290 = vsel %vm652, %v1274, %v1259
        %v1291 = vpack.c.bf16 %v1289, %v1290
        %v1292 = vpack.c.bf16 %v1287, %v1288
        %v1293 = vpack.c.bf16 %v1285, %v1286
        %v1294 = vpack.c.bf16 %v1283, %v1284
        %v1295 = vpack.c.bf16 %v1281, %v1282
        %v1296 = vpack.c.bf16 %v1279, %v1280
        %v1297 = vpack.c.bf16 %v1277, %v1278
        %v1298 = vpack.c.bf16 %v1275, %v1276
        %s1299 = scalar_lea.vmem [#allocation4], 192
        %v1300 = vld [vmem:[%s1299] sm:$0xf]
        %v1301 = vld [vmem:[%s1299 + $0x4] sm:$0xf]
        %v1302 = vld [vmem:[%s1299 + $0x8] sm:$0xf]
        %v1303 = vld [vmem:[%s1299 + $0xc] sm:$0xf]
        %v1304 = vld [vmem:[%s1299 + $0x10] sm:$0xf]
        %v1305 = vld [vmem:[%s1299 + $0x14] sm:$0xf]
        %v1306 = vld [vmem:[%s1299 + $0x18] sm:$0xf]
        %v1307 = vld [vmem:[%s1299 + $0x1c] sm:$0xf]
        %v1308 = vld [vmem:[%s1299 + $0x20] sm:$0xf]
        %v1309 = vld [vmem:[%s1299 + $0x24] sm:$0xf]
        %v1310 = vld [vmem:[%s1299 + $0x28] sm:$0xf]
        %v1311 = vld [vmem:[%s1299 + $0x2c] sm:$0xf]
        %v1312 = vld [vmem:[%s1299 + $0x30] sm:$0xf]
        %v1313 = vld [vmem:[%s1299 + $0x34] sm:$0xf]
        %v1314 = vld [vmem:[%s1299 + $0x38] sm:$0xf]
        %v1315 = vld [vmem:[%s1299 + $0x3c] sm:$0xf]
        %v1316 = vrot.slane %v1073, 1
        %v1317 = vrot.slane %v1074, 1
        %v1318 = vrot.slane %v1075, 1
        %v1319 = vrot.slane %v1076, 1
        %v1320 = vrot.slane %v1077, 1
        %v1321 = vrot.slane %v1078, 1
        %v1322 = vrot.slane %v1079, 1
        %v1323 = vrot.slane %v1080, 1
        %v1324 = vrot.slane %v1081, 1
        %v1325 = vrot.slane %v1082, 1
        %v1326 = vrot.slane %v1083, 1
        %v1327 = vrot.slane %v1084, 1
        %v1328 = vrot.slane %v1085, 1
        %v1329 = vrot.slane %v1086, 1
        %v1330 = vrot.slane %v1087, 1
        %v1331 = vrot.slane %v1088, 1
        %v1332 = vsel %vm709, %v1330, %v1331
        %v1333 = vsel %vm709, %v1329, %v1330
        %v1334 = vsel %vm709, %v1328, %v1329
        %v1335 = vsel %vm709, %v1327, %v1328
        %v1336 = vsel %vm709, %v1326, %v1327
        %v1337 = vsel %vm709, %v1325, %v1326
        %v1338 = vsel %vm709, %v1324, %v1325
        %v1339 = vsel %vm709, %v1323, %v1324
        %v1340 = vsel %vm709, %v1322, %v1323
        %v1341 = vsel %vm709, %v1321, %v1322
        %v1342 = vsel %vm709, %v1320, %v1321
        %v1343 = vsel %vm709, %v1319, %v1320
        %v1344 = vsel %vm709, %v1318, %v1319
        %v1345 = vsel %vm709, %v1317, %v1318
        %v1346 = vsel %vm709, %v1316, %v1317
        %v1347 = vsel %vm709, %v1331, %v1316
        %v1348 = vpack.c.bf16 %v1345, %v1346
        %v1349 = vpack.c.bf16 %v1343, %v1344
        %v1350 = vpack.c.bf16 %v1341, %v1342
        %v1351 = vpack.c.bf16 %v1339, %v1340
        %v1352 = vpack.c.bf16 %v1337, %v1338
        %v1353 = vpack.c.bf16 %v1335, %v1336
        %v1354 = vpack.c.bf16 %v1333, %v1334
        %v1355 = vpack.c.bf16 %v1347, %v1332
        %s1356 = scalar_lea.vmem [#allocation4], 320
        %v1357 = vld [vmem:[%s1356] sm:$0xf]
        %v1358 = vld [vmem:[%s1356 + $0x4] sm:$0xf]
        %v1359 = vld [vmem:[%s1356 + $0x8] sm:$0xf]
        %v1360 = vld [vmem:[%s1356 + $0xc] sm:$0xf]
        %v1361 = vld [vmem:[%s1356 + $0x10] sm:$0xf]
        %v1362 = vld [vmem:[%s1356 + $0x14] sm:$0xf]
        %v1363 = vld [vmem:[%s1356 + $0x18] sm:$0xf]
        %v1364 = vld [vmem:[%s1356 + $0x1c] sm:$0xf]
        %v1365 = vld [vmem:[%s1356 + $0x20] sm:$0xf]
        %v1366 = vld [vmem:[%s1356 + $0x24] sm:$0xf]
        %v1367 = vld [vmem:[%s1356 + $0x28] sm:$0xf]
        %v1368 = vld [vmem:[%s1356 + $0x2c] sm:$0xf]
        %v1369 = vld [vmem:[%s1356 + $0x30] sm:$0xf]
        %v1370 = vld [vmem:[%s1356 + $0x34] sm:$0xf]
        %v1371 = vld [vmem:[%s1356 + $0x38] sm:$0xf]
        %v1372 = vld [vmem:[%s1356 + $0x3c] sm:$0xf]
        %v1389 = vunpack.c.l.b16 %v1357
        %v1390 = vunpack.c.l.b16 %v1358
        %v1391 = vunpack.c.l.b16 %v1359
        %v1392 = vunpack.c.l.b16 %v1360
        %v1393 = vunpack.c.l.b16 %v1361
        %v1394 = vunpack.c.l.b16 %v1362
        %v1395 = vunpack.c.l.b16 %v1363
        %v1396 = vunpack.c.l.b16 %v1364
        %v1397 = vunpack.c.l.b16 %v1365
        %v1398 = vunpack.c.l.b16 %v1366
        %v1399 = vunpack.c.l.b16 %v1367
        %v1400 = vunpack.c.l.b16 %v1368
        %v1401 = vunpack.c.l.b16 %v1369
        %v1402 = vunpack.c.l.b16 %v1370
        %v1403 = vunpack.c.l.b16 %v1371
        %v1404 = vunpack.c.l.b16 %v1372
        %v1405 = vpack.c.b16 %v1390, %v1389
        %v1406 = vpack.c.b16 %v1392, %v1391
        %v1407 = vpack.c.b16 %v1394, %v1393
        %v1408 = vpack.c.b16 %v1396, %v1395
        %v1409 = vpack.c.b16 %v1398, %v1397
        %v1410 = vpack.c.b16 %v1400, %v1399
        %v1411 = vpack.c.b16 %v1402, %v1401
        %v1412 = vpack.c.b16 %v1404, %v1403
        %1421 = vmatprep.subr.bf16.mxu0 0
        %1422 = vmatpush1.bf16.msra.mxu0 %v1405
        %1423 = vmatprep.subr.bf16.mxu0 0
        %1424 = vmatpush1.bf16.msra.mxu0 %v1406
        %1425 = vmatprep.subr.bf16.mxu0 0
        %1426 = vmatpush1.bf16.msra.mxu0 %v1407
        %1427 = vmatprep.subr.bf16.mxu0 0
        %1428 = vmatpush1.bf16.msra.mxu0 %v1408
        %1429 = vmatprep.subr.bf16.mxu0 0
        %1430 = vmatpush1.bf16.msra.mxu0 %v1409
        %1431 = vmatprep.subr.bf16.mxu0 0
        %1432 = vmatpush1.bf16.msra.mxu0 %v1410
        %1433 = vmatprep.subr.bf16.mxu0 0
        %1434 = vmatpush1.bf16.msra.mxu0 %v1411
        %1435 = vmatprep.subr.bf16.mxu0 0
        %1436 = vmatpush1.bf16.msra.mxu0 %v1412
        %1437 = vmatprep.subr.bf16.mxu0 0
        %1438 = vmatpush1.bf16.msra.mxu0 0
        %1439 = vmatprep.subr.bf16.mxu0 0
        %1440 = vmatpush1.bf16.msra.mxu0 0
        %1441 = vmatprep.subr.bf16.mxu0 0
        %1442 = vmatpush1.bf16.msra.mxu0 0
        %1443 = vmatprep.subr.bf16.mxu0 0
        %1444 = vmatpush1.bf16.msra.mxu0 0
        %1445 = vmatprep.subr.bf16.mxu0 0
        %1446 = vmatpush1.bf16.msra.mxu0 0
        %1447 = vmatprep.subr.bf16.mxu0 0
        %1448 = vmatpush1.bf16.msra.mxu0 0
        %1449 = vmatprep.subr.bf16.mxu0 0
        %1450 = vmatpush1.bf16.msra.mxu0 0
        %1451 = vmatprep.subr.bf16.mxu0 0
        %1452 = vmatpush1.bf16.msra.mxu0 0
        %1453 = vmatprep.mubr.bf16.mxu0 0
        %1454 = vmatmul.mubr.bf16.gmra.mrb[0].mxu0 %v1348
        %v1455 = vpop.f32.mrb[0].mxu0
        %v1456 = vadd.f32 0.0, %v1455
        %v1457 = vpop.f32.mrb[0].mxu0
        %v1458 = vpop.f32.mrb[0].mxu0
        %v1459 = vadd.f32 0.0, %v1458
        %v1460 = vpop.f32.mrb[0].mxu0
        %1461 = vmatprep.mubr.bf16.mxu0 0
        %1462 = vmatmul.mubr.bf16.gmra.mrb[0].mxu0 %v1349
        %v1463 = vpop.f32.mrb[0].mxu0
        %v1464 = vadd.f32 0.0, %v1463
        %v1465 = vpop.f32.mrb[0].mxu0
        %v1466 = vpop.f32.mrb[0].mxu0
        %v1467 = vadd.f32 0.0, %v1466
        %v1468 = vpop.f32.mrb[0].mxu0
        %1469 = vmatprep.mubr.bf16.mxu0 0
        %1470 = vmatmul.mubr.bf16.gmra.mrb[0].mxu0 %v1350
        %v1471 = vpop.f32.mrb[0].mxu0
        %v1472 = vadd.f32 0.0, %v1471
        %v1473 = vpop.f32.mrb[0].mxu0
        %v1474 = vpop.f32.mrb[0].mxu0
        %v1475 = vadd.f32 0.0, %v1474
        %v1476 = vpop.f32.mrb[0].mxu0
        %1477 = vmatprep.mubr.bf16.mxu0 0
        %1478 = vmatmul.mubr.bf16.gmra.mrb[0].mxu0 %v1351
        %v1479 = vpop.f32.mrb[0].mxu0
        %v1480 = vadd.f32 0.0, %v1479
        %v1481 = vpop.f32.mrb[0].mxu0
        %v1482 = vpop.f32.mrb[0].mxu0
        %v1483 = vadd.f32 0.0, %v1482
        %v1484 = vpop.f32.mrb[0].mxu0
        %1485 = vmatprep.mubr.bf16.mxu0 0
        %1486 = vmatmul.mubr.bf16.gmra.mrb[0].mxu0 %v1352
        %v1487 = vpop.f32.mrb[0].mxu0
        %v1488 = vadd.f32 0.0, %v1487
        %v1489 = vpop.f32.mrb[0].mxu0
        %v1490 = vpop.f32.mrb[0].mxu0
        %v1491 = vadd.f32 0.0, %v1490
        %v1492 = vpop.f32.mrb[0].mxu0
        %1493 = vmatprep.mubr.bf16.mxu0 0
        %1494 = vmatmul.mubr.bf16.gmra.mrb[0].mxu0 %v1353
        %v1495 = vpop.f32.mrb[0].mxu0
        %v1496 = vadd.f32 0.0, %v1495
        %v1497 = vpop.f32.mrb[0].mxu0
        %v1498 = vpop.f32.mrb[0].mxu0
        %v1499 = vadd.f32 0.0, %v1498
        %v1500 = vpop.f32.mrb[0].mxu0
        %1501 = vmatprep.mubr.bf16.mxu0 0
        %1502 = vmatmul.mubr.bf16.gmra.mrb[0].mxu0 %v1354
        %v1503 = vpop.f32.mrb[0].mxu0
        %v1504 = vadd.f32 0.0, %v1503
        %v1505 = vpop.f32.mrb[0].mxu0
        %v1506 = vpop.f32.mrb[0].mxu0
        %v1507 = vadd.f32 0.0, %v1506
        %v1508 = vpop.f32.mrb[0].mxu0
        %1509 = vmatprep.mubr.bf16.mxu0 0
        %1510 = vmatmul.mubr.bf16.gmra.mrb[0].mxu0 %v1355
        %v1511 = vpop.f32.mrb[0].mxu0
        %v1512 = vadd.f32 0.0, %v1511
        %v1513 = vpop.f32.mrb[0].mxu0
        %v1514 = vpop.f32.mrb[0].mxu0
        %v1515 = vadd.f32 0.0, %v1514
        %v1516 = vpop.f32.mrb[0].mxu0
        %1517 = vdwg.mxu0
        %v1534 = vunpack.c.l.b16 %v1300
        %v1535 = vunpack.c.l.b16 %v1301
        %v1536 = vunpack.c.l.b16 %v1302
        %v1537 = vunpack.c.l.b16 %v1303
        %v1538 = vunpack.c.l.b16 %v1304
        %v1539 = vunpack.c.l.b16 %v1305
        %v1540 = vunpack.c.l.b16 %v1306
        %v1541 = vunpack.c.l.b16 %v1307
        %v1542 = vunpack.c.l.b16 %v1308
        %v1543 = vunpack.c.l.b16 %v1309
        %v1544 = vunpack.c.l.b16 %v1310
        %v1545 = vunpack.c.l.b16 %v1311
        %v1546 = vunpack.c.l.b16 %v1312
        %v1547 = vunpack.c.l.b16 %v1313
        %v1548 = vunpack.c.l.b16 %v1314
        %v1549 = vunpack.c.l.b16 %v1315
        %v1550 = vpack.c.b16 %v1535, %v1534
        %v1551 = vpack.c.b16 %v1537, %v1536
        %v1552 = vpack.c.b16 %v1539, %v1538
        %v1553 = vpack.c.b16 %v1541, %v1540
        %v1554 = vpack.c.b16 %v1543, %v1542
        %v1555 = vpack.c.b16 %v1545, %v1544
        %v1556 = vpack.c.b16 %v1547, %v1546
        %v1557 = vpack.c.b16 %v1549, %v1548
        %1566 = vmatprep.subr.bf16.mxu0 0
        %1567 = vmatpush1.bf16.msra.mxu0 %v1550
        %1568 = vmatprep.subr.bf16.mxu0 0
        %1569 = vmatpush1.bf16.msra.mxu0 %v1551
        %1570 = vmatprep.subr.bf16.mxu0 0
        %1571 = vmatpush1.bf16.msra.mxu0 %v1552
        %1572 = vmatprep.subr.bf16.mxu0 0
        %1573 = vmatpush1.bf16.msra.mxu0 %v1553
        %1574 = vmatprep.subr.bf16.mxu0 0
        %1575 = vmatpush1.bf16.msra.mxu0 %v1554
        %1576 = vmatprep.subr.bf16.mxu0 0
        %1577 = vmatpush1.bf16.msra.mxu0 %v1555
        %1578 = vmatprep.subr.bf16.mxu0 0
        %1579 = vmatpush1.bf16.msra.mxu0 %v1556
        %1580 = vmatprep.subr.bf16.mxu0 0
        %1581 = vmatpush1.bf16.msra.mxu0 %v1557
        %1582 = vmatprep.subr.bf16.mxu0 0
        %1583 = vmatpush1.bf16.msra.mxu0 0
        %1584 = vmatprep.subr.bf16.mxu0 0
        %1585 = vmatpush1.bf16.msra.mxu0 0
        %1586 = vmatprep.subr.bf16.mxu0 0
        %1587 = vmatpush1.bf16.msra.mxu0 0
        %1588 = vmatprep.subr.bf16.mxu0 0
        %1589 = vmatpush1.bf16.msra.mxu0 0
        %1590 = vmatprep.subr.bf16.mxu0 0
        %1591 = vmatpush1.bf16.msra.mxu0 0
        %1592 = vmatprep.subr.bf16.mxu0 0
        %1593 = vmatpush1.bf16.msra.mxu0 0
        %1594 = vmatprep.subr.bf16.mxu0 0
        %1595 = vmatpush1.bf16.msra.mxu0 0
        %1596 = vmatprep.subr.bf16.mxu0 0
        %1597 = vmatpush1.bf16.msra.mxu0 0
        %1598 = vmatprep.mubr.bf16.mxu0 0
        %1599 = vmatmul.mubr.bf16.gmra.mrb[0].mxu0 %v1291
        %v1600 = vpop.f32.mrb[0].mxu0
        %v1601 = vadd.f32 %v1197, %v1600
        %v1602 = vpop.f32.mrb[0].mxu0
        %v1603 = vpop.f32.mrb[0].mxu0
        %v1604 = vadd.f32 %v1200, %v1603
        %v1605 = vpop.f32.mrb[0].mxu0
        %1606 = vmatprep.mubr.bf16.mxu0 0
        %1607 = vmatmul.mubr.bf16.gmra.mrb[0].mxu0 %v1292
        %v1608 = vpop.f32.mrb[0].mxu0
        %v1609 = vadd.f32 %v1205, %v1608
        %v1610 = vpop.f32.mrb[0].mxu0
        %v1611 = vpop.f32.mrb[0].mxu0
        %v1612 = vadd.f32 %v1208, %v1611
        %v1613 = vpop.f32.mrb[0].mxu0
        %1614 = vmatprep.mubr.bf16.mxu0 0
        %1615 = vmatmul.mubr.bf16.gmra.mrb[0].mxu0 %v1293
        %v1616 = vpop.f32.mrb[0].mxu0
        %v1617 = vadd.f32 %v1213, %v1616
        %v1618 = vpop.f32.mrb[0].mxu0
        %v1619 = vpop.f32.mrb[0].mxu0
        %v1620 = vadd.f32 %v1216, %v1619
        %v1621 = vpop.f32.mrb[0].mxu0
        %1622 = vmatprep.mubr.bf16.mxu0 0
        %1623 = vmatmul.mubr.bf16.gmra.mrb[0].mxu0 %v1294
        %v1624 = vpop.f32.mrb[0].mxu0
        %v1625 = vadd.f32 %v1221, %v1624
        %v1626 = vpop.f32.mrb[0].mxu0
        %v1627 = vpop.f32.mrb[0].mxu0
        %v1628 = vadd.f32 %v1224, %v1627
        %v1629 = vpop.f32.mrb[0].mxu0
        %1630 = vmatprep.mubr.bf16.mxu0 0
        %1631 = vmatmul.mubr.bf16.gmra.mrb[0].mxu0 %v1295
        %v1632 = vpop.f32.mrb[0].mxu0
        %v1633 = vadd.f32 %v1229, %v1632
        %v1634 = vpop.f32.mrb[0].mxu0
        %v1635 = vpop.f32.mrb[0].mxu0
        %v1636 = vadd.f32 %v1232, %v1635
        %v1637 = vpop.f32.mrb[0].mxu0
        %1638 = vmatprep.mubr.bf16.mxu0 0
        %1639 = vmatmul.mubr.bf16.gmra.mrb[0].mxu0 %v1296
        %v1640 = vpop.f32.mrb[0].mxu0
        %v1641 = vadd.f32 %v1237, %v1640
        %v1642 = vpop.f32.mrb[0].mxu0
        %v1643 = vpop.f32.mrb[0].mxu0
        %v1644 = vadd.f32 %v1240, %v1643
        %v1645 = vpop.f32.mrb[0].mxu0
        %1646 = vmatprep.mubr.bf16.mxu0 0
        %1647 = vmatmul.mubr.bf16.gmra.mrb[0].mxu0 %v1297
        %v1648 = vpop.f32.mrb[0].mxu0
        %v1649 = vadd.f32 %v1245, %v1648
        %v1650 = vpop.f32.mrb[0].mxu0
        %v1651 = vpop.f32.mrb[0].mxu0
        %v1652 = vadd.f32 %v1248, %v1651
        %v1653 = vpop.f32.mrb[0].mxu0
        %1654 = vmatprep.mubr.bf16.mxu0 0
        %1655 = vmatmul.mubr.bf16.gmra.mrb[0].mxu0 %v1298
        %v1656 = vpop.f32.mrb[0].mxu0
        %v1657 = vadd.f32 %v1253, %v1656
        %v1658 = vpop.f32.mrb[0].mxu0
        %v1659 = vpop.f32.mrb[0].mxu0
        %v1660 = vadd.f32 %v1256, %v1659
        %v1661 = vpop.f32.mrb[0].mxu0
        %1662 = vdwg.mxu0
        %v1663 = vadd.f32 %v1601, %v1456
        %v1664 = vadd.f32 %v1604, %v1459
        %v1665 = vadd.f32 %v1609, %v1464
        %v1666 = vadd.f32 %v1612, %v1467
        %v1667 = vadd.f32 %v1617, %v1472
        %v1668 = vadd.f32 %v1620, %v1475
        %v1669 = vadd.f32 %v1625, %v1480
        %v1670 = vadd.f32 %v1628, %v1483
        %v1671 = vadd.f32 %v1633, %v1488
        %v1672 = vadd.f32 %v1636, %v1491
        %v1673 = vadd.f32 %v1641, %v1496
        %v1674 = vadd.f32 %v1644, %v1499
        %v1675 = vadd.f32 %v1649, %v1504
        %v1676 = vadd.f32 %v1652, %v1507
        %v1677 = vadd.f32 %v1657, %v1512
        %v1678 = vadd.f32 %v1660, %v1515
        %v1679 = vld [vmem:[#allocation3] sm:$0xff]
        %v1680 = vld [vmem:[#allocation3 + $0x8] sm:$0xff]
        %v1681 = vld [vmem:[#allocation3 + $0x10] sm:$0xff]
        %v1682 = vld [vmem:[#allocation3 + $0x18] sm:$0xff]
        %v1683 = vld [vmem:[#allocation3 + $0x20] sm:$0xff]
        %v1684 = vld [vmem:[#allocation3 + $0x28] sm:$0xff]
        %v1685 = vld [vmem:[#allocation3 + $0x30] sm:$0xff]
        %v1686 = vld [vmem:[#allocation3 + $0x38] sm:$0xff]
        %v1687 = vld [vmem:[#allocation3 + $0x40] sm:$0xff]
        %v1688 = vld [vmem:[#allocation3 + $0x48] sm:$0xff]
        %v1689 = vld [vmem:[#allocation3 + $0x50] sm:$0xff]
        %v1690 = vld [vmem:[#allocation3 + $0x58] sm:$0xff]
        %v1691 = vld [vmem:[#allocation3 + $0x60] sm:$0xff]
        %v1692 = vld [vmem:[#allocation3 + $0x68] sm:$0xff]
        %v1693 = vld [vmem:[#allocation3 + $0x70] sm:$0xff]
        %v1694 = vld [vmem:[#allocation3 + $0x78] sm:$0xff]
        %v1695 = vadd.f32 %v1679, %v1663
        %v1696 = vadd.f32 %v1680, %v1664
        %v1697 = vadd.f32 %v1681, %v1665
        %v1698 = vadd.f32 %v1682, %v1666
        %v1699 = vadd.f32 %v1683, %v1667
        %v1700 = vadd.f32 %v1684, %v1668
        %v1701 = vadd.f32 %v1685, %v1669
        %v1702 = vadd.f32 %v1686, %v1670
        %v1703 = vadd.f32 %v1687, %v1671
        %v1704 = vadd.f32 %v1688, %v1672
        %v1705 = vadd.f32 %v1689, %v1673
        %v1706 = vadd.f32 %v1690, %v1674
        %v1707 = vadd.f32 %v1691, %v1675
        %v1708 = vadd.f32 %v1692, %v1676
        %v1709 = vadd.f32 %v1693, %v1677
        %v1710 = vadd.f32 %v1694, %v1678
        %1711 = vst [vmem:[#allocation3] sm:$0xff] %v1695
        %1712 = vst [vmem:[#allocation3 + $0x8] sm:$0xff] %v1696
        %1713 = vst [vmem:[#allocation3 + $0x10] sm:$0xff] %v1697
        %1714 = vst [vmem:[#allocation3 + $0x18] sm:$0xff] %v1698
        %1715 = vst [vmem:[#allocation3 + $0x20] sm:$0xff] %v1699
        %1716 = vst [vmem:[#allocation3 + $0x28] sm:$0xff] %v1700
        %1717 = vst [vmem:[#allocation3 + $0x30] sm:$0xff] %v1701
        %1718 = vst [vmem:[#allocation3 + $0x38] sm:$0xff] %v1702
        %1719 = vst [vmem:[#allocation3 + $0x40] sm:$0xff] %v1703
        %1720 = vst [vmem:[#allocation3 + $0x48] sm:$0xff] %v1704
        %1721 = vst [vmem:[#allocation3 + $0x50] sm:$0xff] %v1705
        %1722 = vst [vmem:[#allocation3 + $0x58] sm:$0xff] %v1706
        %1723 = vst [vmem:[#allocation3 + $0x60] sm:$0xff] %v1707
        %1724 = vst [vmem:[#allocation3 + $0x68] sm:$0xff] %v1708
        %1725 = vst [vmem:[#allocation3 + $0x70] sm:$0xff] %v1709
        %1726 = vst [vmem:[#allocation3 + $0x78] sm:$0xff] %v1710
        %v1727 = vld [vmem:[#allocation2 + $0x28] sm:$0xff]
        %v1728 = vld [vmem:[#allocation2 + $0x30] sm:$0xff]
        %v1729 = vld [vmem:[#allocation2 + $0x38] sm:$0xff]
        %v1730 = vld [vmem:[#allocation2 + $0x40] sm:$0xff]
        %v1731 = vld [vmem:[#allocation2 + $0x48] sm:$0xff]
        %v1732 = vld [vmem:[#allocation2 + $0x50] sm:$0xff]
        %v1733 = vld [vmem:[#allocation2 + $0x58] sm:$0xff]
        %v1734 = vld [vmem:[#allocation2 + $0x60] sm:$0xff]
        %v1735 = vld [vmem:[#allocation2 + $0x68] sm:$0xff]
        %v1736 = vld [vmem:[#allocation2 + $0x70] sm:$0xff]
        %v1737 = vld [vmem:[#allocation2 + $0x78] sm:$0xff]
        %v1738 = vld [vmem:[#allocation2 + $0x80] sm:$0xff]
        %v1739 = vld [vmem:[#allocation2 + $0x88] sm:$0xff]
        %v1740 = vld [vmem:[#allocation2 + $0x90] sm:$0xff]
        %v1741 = vld [vmem:[#allocation2 + $0x98] sm:$0xff]
        %v1742 = vld [vmem:[#allocation2 + $0xa0] sm:$0xff]
        %v1743 = vpack.c.bf16 %v1728, %v1727
        %v1744 = vpack.c.bf16 %v1730, %v1729
        %v1745 = vpack.c.bf16 %v1732, %v1731
        %v1746 = vpack.c.bf16 %v1734, %v1733
        %v1747 = vpack.c.bf16 %v1736, %v1735
        %v1748 = vpack.c.bf16 %v1738, %v1737
        %v1749 = vpack.c.bf16 %v1740, %v1739
        %v1750 = vpack.c.bf16 %v1742, %v1741
        %s1751 = scalar_lea.vmem [#allocation4], 448
        %v1752 = vld [vmem:[%s1751] sm:$0xf]
        %v1753 = vld [vmem:[%s1751 + $0x4] sm:$0xf]
        %v1754 = vld [vmem:[%s1751 + $0x8] sm:$0xf]
        %v1755 = vld [vmem:[%s1751 + $0xc] sm:$0xf]
        %v1756 = vld [vmem:[%s1751 + $0x10] sm:$0xf]
        %v1757 = vld [vmem:[%s1751 + $0x14] sm:$0xf]
        %v1758 = vld [vmem:[%s1751 + $0x18] sm:$0xf]
        %v1759 = vld [vmem:[%s1751 + $0x1c] sm:$0xf]
        %v1760 = vld [vmem:[%s1751 + $0x20] sm:$0xf]
        %v1761 = vld [vmem:[%s1751 + $0x24] sm:$0xf]
        %v1762 = vld [vmem:[%s1751 + $0x28] sm:$0xf]
        %v1763 = vld [vmem:[%s1751 + $0x2c] sm:$0xf]
        %v1764 = vld [vmem:[%s1751 + $0x30] sm:$0xf]
        %v1765 = vld [vmem:[%s1751 + $0x34] sm:$0xf]
        %v1766 = vld [vmem:[%s1751 + $0x38] sm:$0xf]
        %v1767 = vld [vmem:[%s1751 + $0x3c] sm:$0xf]
        %v1784 = vunpack.c.l.b16 %v1752
        %v1785 = vunpack.c.l.b16 %v1753
        %v1786 = vunpack.c.l.b16 %v1754
        %v1787 = vunpack.c.l.b16 %v1755
        %v1788 = vunpack.c.l.b16 %v1756
        %v1789 = vunpack.c.l.b16 %v1757
        %v1790 = vunpack.c.l.b16 %v1758
        %v1791 = vunpack.c.l.b16 %v1759
        %v1792 = vunpack.c.l.b16 %v1760
        %v1793 = vunpack.c.l.b16 %v1761
        %v1794 = vunpack.c.l.b16 %v1762
        %v1795 = vunpack.c.l.b16 %v1763
        %v1796 = vunpack.c.l.b16 %v1764
        %v1797 = vunpack.c.l.b16 %v1765
        %v1798 = vunpack.c.l.b16 %v1766
        %v1799 = vunpack.c.l.b16 %v1767
        %v1800 = vpack.c.b16 %v1785, %v1784
        %v1801 = vpack.c.b16 %v1787, %v1786
        %v1802 = vpack.c.b16 %v1789, %v1788
        %v1803 = vpack.c.b16 %v1791, %v1790
        %v1804 = vpack.c.b16 %v1793, %v1792
        %v1805 = vpack.c.b16 %v1795, %v1794
        %v1806 = vpack.c.b16 %v1797, %v1796
        %v1807 = vpack.c.b16 %v1799, %v1798
        %1816 = vmatprep.subr.bf16.mxu0 0
        %1817 = vmatpush1.bf16.msra.mxu0 %v1800
        %1818 = vmatprep.subr.bf16.mxu0 0
        %1819 = vmatpush1.bf16.msra.mxu0 %v1801
        %1820 = vmatprep.subr.bf16.mxu0 0
        %1821 = vmatpush1.bf16.msra.mxu0 %v1802
        %1822 = vmatprep.subr.bf16.mxu0 0
        %1823 = vmatpush1.bf16.msra.mxu0 %v1803
        %1824 = vmatprep.subr.bf16.mxu0 0
        %1825 = vmatpush1.bf16.msra.mxu0 %v1804
        %1826 = vmatprep.subr.bf16.mxu0 0
        %1827 = vmatpush1.bf16.msra.mxu0 %v1805
        %1828 = vmatprep.subr.bf16.mxu0 0
        %1829 = vmatpush1.bf16.msra.mxu0 %v1806
        %1830 = vmatprep.subr.bf16.mxu0 0
        %1831 = vmatpush1.bf16.msra.mxu0 %v1807
        %1832 = vmatprep.subr.bf16.mxu0 0
        %1833 = vmatpush1.bf16.msra.mxu0 0
        %1834 = vmatprep.subr.bf16.mxu0 0
        %1835 = vmatpush1.bf16.msra.mxu0 0
        %1836 = vmatprep.subr.bf16.mxu0 0
        %1837 = vmatpush1.bf16.msra.mxu0 0
        %1838 = vmatprep.subr.bf16.mxu0 0
        %1839 = vmatpush1.bf16.msra.mxu0 0
        %1840 = vmatprep.subr.bf16.mxu0 0
        %1841 = vmatpush1.bf16.msra.mxu0 0
        %1842 = vmatprep.subr.bf16.mxu0 0
        %1843 = vmatpush1.bf16.msra.mxu0 0
        %1844 = vmatprep.subr.bf16.mxu0 0
        %1845 = vmatpush1.bf16.msra.mxu0 0
        %1846 = vmatprep.subr.bf16.mxu0 0
        %1847 = vmatpush1.bf16.msra.mxu0 0
        %1848 = vmatprep.mubr.bf16.mxu0 0
        %1849 = vmatmul.mubr.bf16.gmra.mrb[0].mxu0 %v1743
        %v1850 = vpop.f32.mrb[0].mxu0
        %v1851 = vadd.f32 0.0, %v1850
        %v1852 = vpop.f32.mrb[0].mxu0
        %v1853 = vpop.f32.mrb[0].mxu0
        %v1854 = vadd.f32 0.0, %v1853
        %v1855 = vpop.f32.mrb[0].mxu0
        %1856 = vmatprep.mubr.bf16.mxu0 0
        %1857 = vmatmul.mubr.bf16.gmra.mrb[0].mxu0 %v1744
        %v1858 = vpop.f32.mrb[0].mxu0
        %v1859 = vadd.f32 0.0, %v1858
        %v1860 = vpop.f32.mrb[0].mxu0
        %v1861 = vpop.f32.mrb[0].mxu0
        %v1862 = vadd.f32 0.0, %v1861
        %v1863 = vpop.f32.mrb[0].mxu0
        %1864 = vmatprep.mubr.bf16.mxu0 0
        %1865 = vmatmul.mubr.bf16.gmra.mrb[0].mxu0 %v1745
        %v1866 = vpop.f32.mrb[0].mxu0
        %v1867 = vadd.f32 0.0, %v1866
        %v1868 = vpop.f32.mrb[0].mxu0
        %v1869 = vpop.f32.mrb[0].mxu0
        %v1870 = vadd.f32 0.0, %v1869
        %v1871 = vpop.f32.mrb[0].mxu0
        %1872 = vmatprep.mubr.bf16.mxu0 0
        %1873 = vmatmul.mubr.bf16.gmra.mrb[0].mxu0 %v1746
        %v1874 = vpop.f32.mrb[0].mxu0
        %v1875 = vadd.f32 0.0, %v1874
        %v1876 = vpop.f32.mrb[0].mxu0
        %v1877 = vpop.f32.mrb[0].mxu0
        %v1878 = vadd.f32 0.0, %v1877
        %v1879 = vpop.f32.mrb[0].mxu0
        %1880 = vmatprep.mubr.bf16.mxu0 0
        %1881 = vmatmul.mubr.bf16.gmra.mrb[0].mxu0 %v1747
        %v1882 = vpop.f32.mrb[0].mxu0
        %v1883 = vadd.f32 0.0, %v1882
        %v1884 = vpop.f32.mrb[0].mxu0
        %v1885 = vpop.f32.mrb[0].mxu0
        %v1886 = vadd.f32 0.0, %v1885
        %v1887 = vpop.f32.mrb[0].mxu0
        %1888 = vmatprep.mubr.bf16.mxu0 0
        %1889 = vmatmul.mubr.bf16.gmra.mrb[0].mxu0 %v1748
        %v1890 = vpop.f32.mrb[0].mxu0
        %v1891 = vadd.f32 0.0, %v1890
        %v1892 = vpop.f32.mrb[0].mxu0
        %v1893 = vpop.f32.mrb[0].mxu0
        %v1894 = vadd.f32 0.0, %v1893
        %v1895 = vpop.f32.mrb[0].mxu0
        %1896 = vmatprep.mubr.bf16.mxu0 0
        %1897 = vmatmul.mubr.bf16.gmra.mrb[0].mxu0 %v1749
        %v1898 = vpop.f32.mrb[0].mxu0
        %v1899 = vadd.f32 0.0, %v1898
        %v1900 = vpop.f32.mrb[0].mxu0
        %v1901 = vpop.f32.mrb[0].mxu0
        %v1902 = vadd.f32 0.0, %v1901
        %v1903 = vpop.f32.mrb[0].mxu0
        %1904 = vmatprep.mubr.bf16.mxu0 0
        %1905 = vmatmul.mubr.bf16.gmra.mrb[0].mxu0 %v1750
        %v1906 = vpop.f32.mrb[0].mxu0
        %v1907 = vadd.f32 0.0, %v1906
        %v1908 = vpop.f32.mrb[0].mxu0
        %v1909 = vpop.f32.mrb[0].mxu0
        %v1910 = vadd.f32 0.0, %v1909
        %v1911 = vpop.f32.mrb[0].mxu0
        %1912 = vdwg.mxu0
        %v1913 = vrot.slane %v1727, 7
        %v1914 = vrot.slane %v1728, 7
        %v1915 = vrot.slane %v1729, 7
        %v1916 = vrot.slane %v1730, 7
        %v1917 = vrot.slane %v1731, 7
        %v1918 = vrot.slane %v1732, 7
        %v1919 = vrot.slane %v1733, 7
        %v1920 = vrot.slane %v1734, 7
        %v1921 = vrot.slane %v1735, 7
        %v1922 = vrot.slane %v1736, 7
        %v1923 = vrot.slane %v1737, 7
        %v1924 = vrot.slane %v1738, 7
        %v1925 = vrot.slane %v1739, 7
        %v1926 = vrot.slane %v1740, 7
        %v1927 = vrot.slane %v1741, 7
        %v1928 = vrot.slane %v1742, 7
        %v1929 = vsel %vm652, %v1927, %v1928
        %v1930 = vsel %vm652, %v1926, %v1927
        %v1931 = vsel %vm652, %v1925, %v1926
        %v1932 = vsel %vm652, %v1924, %v1925
        %v1933 = vsel %vm652, %v1923, %v1924
        %v1934 = vsel %vm652, %v1922, %v1923
        %v1935 = vsel %vm652, %v1921, %v1922
        %v1936 = vsel %vm652, %v1920, %v1921
        %v1937 = vsel %vm652, %v1919, %v1920
        %v1938 = vsel %vm652, %v1918, %v1919
        %v1939 = vsel %vm652, %v1917, %v1918
        %v1940 = vsel %vm652, %v1916, %v1917
        %v1941 = vsel %vm652, %v1915, %v1916
        %v1942 = vsel %vm652, %v1914, %v1915
        %v1943 = vsel %vm652, %v1913, %v1914
        %v1944 = vsel %vm652, %v1928, %v1913
        %v1945 = vpack.c.bf16 %v1943, %v1944
        %v1946 = vpack.c.bf16 %v1941, %v1942
        %v1947 = vpack.c.bf16 %v1939, %v1940
        %v1948 = vpack.c.bf16 %v1937, %v1938
        %v1949 = vpack.c.bf16 %v1935, %v1936
        %v1950 = vpack.c.bf16 %v1933, %v1934
        %v1951 = vpack.c.bf16 %v1931, %v1932
        %v1952 = vpack.c.bf16 %v1929, %v1930
        %s1953 = scalar_lea.vmem [#allocation4], 384
        %v1954 = vld [vmem:[%s1953] sm:$0xf]
        %v1955 = vld [vmem:[%s1953 + $0x4] sm:$0xf]
        %v1956 = vld [vmem:[%s1953 + $0x8] sm:$0xf]
        %v1957 = vld [vmem:[%s1953 + $0xc] sm:$0xf]
        %v1958 = vld [vmem:[%s1953 + $0x10] sm:$0xf]
        %v1959 = vld [vmem:[%s1953 + $0x14] sm:$0xf]
        %v1960 = vld [vmem:[%s1953 + $0x18] sm:$0xf]
        %v1961 = vld [vmem:[%s1953 + $0x1c] sm:$0xf]
        %v1962 = vld [vmem:[%s1953 + $0x20] sm:$0xf]
        %v1963 = vld [vmem:[%s1953 + $0x24] sm:$0xf]
        %v1964 = vld [vmem:[%s1953 + $0x28] sm:$0xf]
        %v1965 = vld [vmem:[%s1953 + $0x2c] sm:$0xf]
        %v1966 = vld [vmem:[%s1953 + $0x30] sm:$0xf]
        %v1967 = vld [vmem:[%s1953 + $0x34] sm:$0xf]
        %v1968 = vld [vmem:[%s1953 + $0x38] sm:$0xf]
        %v1969 = vld [vmem:[%s1953 + $0x3c] sm:$0xf]
        %v1970 = vrot.slane %v1727, 1
        %v1971 = vrot.slane %v1728, 1
        %v1972 = vrot.slane %v1729, 1
        %v1973 = vrot.slane %v1730, 1
        %v1974 = vrot.slane %v1731, 1
        %v1975 = vrot.slane %v1732, 1
        %v1976 = vrot.slane %v1733, 1
        %v1977 = vrot.slane %v1734, 1
        %v1978 = vrot.slane %v1735, 1
        %v1979 = vrot.slane %v1736, 1
        %v1980 = vrot.slane %v1737, 1
        %v1981 = vrot.slane %v1738, 1
        %v1982 = vrot.slane %v1739, 1
        %v1983 = vrot.slane %v1740, 1
        %v1984 = vrot.slane %v1741, 1
        %v1985 = vrot.slane %v1742, 1
        %v1986 = vsel %vm709, %v1984, %v1985
        %v1987 = vsel %vm709, %v1983, %v1984
        %v1988 = vsel %vm709, %v1982, %v1983
        %v1989 = vsel %vm709, %v1981, %v1982
        %v1990 = vsel %vm709, %v1980, %v1981
        %v1991 = vsel %vm709, %v1979, %v1980
        %v1992 = vsel %vm709, %v1978, %v1979
        %v1993 = vsel %vm709, %v1977, %v1978
        %v1994 = vsel %vm709, %v1976, %v1977
        %v1995 = vsel %vm709, %v1975, %v1976
        %v1996 = vsel %vm709, %v1974, %v1975
        %v1997 = vsel %vm709, %v1973, %v1974
        %v1998 = vsel %vm709, %v1972, %v1973
        %v1999 = vsel %vm709, %v1971, %v1972
        %v2000 = vsel %vm709, %v1970, %v1971
        %v2001 = vsel %vm709, %v1985, %v1970
        %v2002 = vpack.c.bf16 %v1999, %v2000
        %v2003 = vpack.c.bf16 %v1997, %v1998
        %v2004 = vpack.c.bf16 %v1995, %v1996
        %v2005 = vpack.c.bf16 %v1993, %v1994
        %v2006 = vpack.c.bf16 %v1991, %v1992
        %v2007 = vpack.c.bf16 %v1989, %v1990
        %v2008 = vpack.c.bf16 %v1987, %v1988
        %v2009 = vpack.c.bf16 %v2001, %v1986
        %s2010 = scalar_lea.vmem [#allocation4], 512
        %v2011 = vld [vmem:[%s2010] sm:$0xf]
        %v2012 = vld [vmem:[%s2010 + $0x4] sm:$0xf]
        %v2013 = vld [vmem:[%s2010 + $0x8] sm:$0xf]
        %v2014 = vld [vmem:[%s2010 + $0xc] sm:$0xf]
        %v2015 = vld [vmem:[%s2010 + $0x10] sm:$0xf]
        %v2016 = vld [vmem:[%s2010 + $0x14] sm:$0xf]
        %v2017 = vld [vmem:[%s2010 + $0x18] sm:$0xf]
        %v2018 = vld [vmem:[%s2010 + $0x1c] sm:$0xf]
        %v2019 = vld [vmem:[%s2010 + $0x20] sm:$0xf]
        %v2020 = vld [vmem:[%s2010 + $0x24] sm:$0xf]
        %v2021 = vld [vmem:[%s2010 + $0x28] sm:$0xf]
        %v2022 = vld [vmem:[%s2010 + $0x2c] sm:$0xf]
        %v2023 = vld [vmem:[%s2010 + $0x30] sm:$0xf]
        %v2024 = vld [vmem:[%s2010 + $0x34] sm:$0xf]
        %v2025 = vld [vmem:[%s2010 + $0x38] sm:$0xf]
        %v2026 = vld [vmem:[%s2010 + $0x3c] sm:$0xf]
        %v2043 = vunpack.c.l.b16 %v2011
        %v2044 = vunpack.c.l.b16 %v2012
        %v2045 = vunpack.c.l.b16 %v2013
        %v2046 = vunpack.c.l.b16 %v2014
        %v2047 = vunpack.c.l.b16 %v2015
        %v2048 = vunpack.c.l.b16 %v2016
        %v2049 = vunpack.c.l.b16 %v2017
        %v2050 = vunpack.c.l.b16 %v2018
        %v2051 = vunpack.c.l.b16 %v2019
        %v2052 = vunpack.c.l.b16 %v2020
        %v2053 = vunpack.c.l.b16 %v2021
        %v2054 = vunpack.c.l.b16 %v2022
        %v2055 = vunpack.c.l.b16 %v2023
        %v2056 = vunpack.c.l.b16 %v2024
        %v2057 = vunpack.c.l.b16 %v2025
        %v2058 = vunpack.c.l.b16 %v2026
        %v2059 = vpack.c.b16 %v2044, %v2043
        %v2060 = vpack.c.b16 %v2046, %v2045
        %v2061 = vpack.c.b16 %v2048, %v2047
        %v2062 = vpack.c.b16 %v2050, %v2049
        %v2063 = vpack.c.b16 %v2052, %v2051
        %v2064 = vpack.c.b16 %v2054, %v2053
        %v2065 = vpack.c.b16 %v2056, %v2055
        %v2066 = vpack.c.b16 %v2058, %v2057
        %2075 = vmatprep.subr.bf16.mxu0 0
        %2076 = vmatpush1.bf16.msra.mxu0 %v2059
        %2077 = vmatprep.subr.bf16.mxu0 0
        %2078 = vmatpush1.bf16.msra.mxu0 %v2060
        %2079 = vmatprep.subr.bf16.mxu0 0
        %2080 = vmatpush1.bf16.msra.mxu0 %v2061
        %2081 = vmatprep.subr.bf16.mxu0 0
        %2082 = vmatpush1.bf16.msra.mxu0 %v2062
        %2083 = vmatprep.subr.bf16.mxu0 0
        %2084 = vmatpush1.bf16.msra.mxu0 %v2063
        %2085 = vmatprep.subr.bf16.mxu0 0
        %2086 = vmatpush1.bf16.msra.mxu0 %v2064
        %2087 = vmatprep.subr.bf16.mxu0 0
        %2088 = vmatpush1.bf16.msra.mxu0 %v2065
        %2089 = vmatprep.subr.bf16.mxu0 0
        %2090 = vmatpush1.bf16.msra.mxu0 %v2066
        %2091 = vmatprep.subr.bf16.mxu0 0
        %2092 = vmatpush1.bf16.msra.mxu0 0
        %2093 = vmatprep.subr.bf16.mxu0 0
        %2094 = vmatpush1.bf16.msra.mxu0 0
        %2095 = vmatprep.subr.bf16.mxu0 0
        %2096 = vmatpush1.bf16.msra.mxu0 0
        %2097 = vmatprep.subr.bf16.mxu0 0
        %2098 = vmatpush1.bf16.msra.mxu0 0
        %2099 = vmatprep.subr.bf16.mxu0 0
        %2100 = vmatpush1.bf16.msra.mxu0 0
        %2101 = vmatprep.subr.bf16.mxu0 0
        %2102 = vmatpush1.bf16.msra.mxu0 0
        %2103 = vmatprep.subr.bf16.mxu0 0
        %2104 = vmatpush1.bf16.msra.mxu0 0
        %2105 = vmatprep.subr.bf16.mxu0 0
        %2106 = vmatpush1.bf16.msra.mxu0 0
        %2107 = vmatprep.mubr.bf16.mxu0 0
        %2108 = vmatmul.mubr.bf16.gmra.mrb[0].mxu0 %v2002
        %v2109 = vpop.f32.mrb[0].mxu0
        %v2110 = vadd.f32 0.0, %v2109
        %v2111 = vpop.f32.mrb[0].mxu0
        %v2112 = vpop.f32.mrb[0].mxu0
        %v2113 = vadd.f32 0.0, %v2112
        %v2114 = vpop.f32.mrb[0].mxu0
        %2115 = vmatprep.mubr.bf16.mxu0 0
        %2116 = vmatmul.mubr.bf16.gmra.mrb[0].mxu0 %v2003
        %v2117 = vpop.f32.mrb[0].mxu0
        %v2118 = vadd.f32 0.0, %v2117
        %v2119 = vpop.f32.mrb[0].mxu0
        %v2120 = vpop.f32.mrb[0].mxu0
        %v2121 = vadd.f32 0.0, %v2120
        %v2122 = vpop.f32.mrb[0].mxu0
        %2123 = vmatprep.mubr.bf16.mxu0 0
        %2124 = vmatmul.mubr.bf16.gmra.mrb[0].mxu0 %v2004
        %v2125 = vpop.f32.mrb[0].mxu0
        %v2126 = vadd.f32 0.0, %v2125
        %v2127 = vpop.f32.mrb[0].mxu0
        %v2128 = vpop.f32.mrb[0].mxu0
        %v2129 = vadd.f32 0.0, %v2128
        %v2130 = vpop.f32.mrb[0].mxu0
        %2131 = vmatprep.mubr.bf16.mxu0 0
        %2132 = vmatmul.mubr.bf16.gmra.mrb[0].mxu0 %v2005
        %v2133 = vpop.f32.mrb[0].mxu0
        %v2134 = vadd.f32 0.0, %v2133
        %v2135 = vpop.f32.mrb[0].mxu0
        %v2136 = vpop.f32.mrb[0].mxu0
        %v2137 = vadd.f32 0.0, %v2136
        %v2138 = vpop.f32.mrb[0].mxu0
        %2139 = vmatprep.mubr.bf16.mxu0 0
        %2140 = vmatmul.mubr.bf16.gmra.mrb[0].mxu0 %v2006
        %v2141 = vpop.f32.mrb[0].mxu0
        %v2142 = vadd.f32 0.0, %v2141
        %v2143 = vpop.f32.mrb[0].mxu0
        %v2144 = vpop.f32.mrb[0].mxu0
        %v2145 = vadd.f32 0.0, %v2144
        %v2146 = vpop.f32.mrb[0].mxu0
        %2147 = vmatprep.mubr.bf16.mxu0 0
        %2148 = vmatmul.mubr.bf16.gmra.mrb[0].mxu0 %v2007
        %v2149 = vpop.f32.mrb[0].mxu0
        %v2150 = vadd.f32 0.0, %v2149
        %v2151 = vpop.f32.mrb[0].mxu0
        %v2152 = vpop.f32.mrb[0].mxu0
        %v2153 = vadd.f32 0.0, %v2152
        %v2154 = vpop.f32.mrb[0].mxu0
        %2155 = vmatprep.mubr.bf16.mxu0 0
        %2156 = vmatmul.mubr.bf16.gmra.mrb[0].mxu0 %v2008
        %v2157 = vpop.f32.mrb[0].mxu0
        %v2158 = vadd.f32 0.0, %v2157
        %v2159 = vpop.f32.mrb[0].mxu0
        %v2160 = vpop.f32.mrb[0].mxu0
        %v2161 = vadd.f32 0.0, %v2160
        %v2162 = vpop.f32.mrb[0].mxu0
        %2163 = vmatprep.mubr.bf16.mxu0 0
        %2164 = vmatmul.mubr.bf16.gmra.mrb[0].mxu0 %v2009
        %v2165 = vpop.f32.mrb[0].mxu0
        %v2166 = vadd.f32 0.0, %v2165
        %v2167 = vpop.f32.mrb[0].mxu0
        %v2168 = vpop.f32.mrb[0].mxu0
        %v2169 = vadd.f32 0.0, %v2168
        %v2170 = vpop.f32.mrb[0].mxu0
        %2171 = vdwg.mxu0
        %v2188 = vunpack.c.l.b16 %v1954
        %v2189 = vunpack.c.l.b16 %v1955
        %v2190 = vunpack.c.l.b16 %v1956
        %v2191 = vunpack.c.l.b16 %v1957
        %v2192 = vunpack.c.l.b16 %v1958
        %v2193 = vunpack.c.l.b16 %v1959
        %v2194 = vunpack.c.l.b16 %v1960
        %v2195 = vunpack.c.l.b16 %v1961
        %v2196 = vunpack.c.l.b16 %v1962
        %v2197 = vunpack.c.l.b16 %v1963
        %v2198 = vunpack.c.l.b16 %v1964
        %v2199 = vunpack.c.l.b16 %v1965
        %v2200 = vunpack.c.l.b16 %v1966
        %v2201 = vunpack.c.l.b16 %v1967
        %v2202 = vunpack.c.l.b16 %v1968
        %v2203 = vunpack.c.l.b16 %v1969
        %v2204 = vpack.c.b16 %v2189, %v2188
        %v2205 = vpack.c.b16 %v2191, %v2190
        %v2206 = vpack.c.b16 %v2193, %v2192
        %v2207 = vpack.c.b16 %v2195, %v2194
        %v2208 = vpack.c.b16 %v2197, %v2196
        %v2209 = vpack.c.b16 %v2199, %v2198
        %v2210 = vpack.c.b16 %v2201, %v2200
        %v2211 = vpack.c.b16 %v2203, %v2202
        %2220 = vmatprep.subr.bf16.mxu0 0
        %2221 = vmatpush1.bf16.msra.mxu0 %v2204
        %2222 = vmatprep.subr.bf16.mxu0 0
        %2223 = vmatpush1.bf16.msra.mxu0 %v2205
        %2224 = vmatprep.subr.bf16.mxu0 0
        %2225 = vmatpush1.bf16.msra.mxu0 %v2206
        %2226 = vmatprep.subr.bf16.mxu0 0
        %2227 = vmatpush1.bf16.msra.mxu0 %v2207
        %2228 = vmatprep.subr.bf16.mxu0 0
        %2229 = vmatpush1.bf16.msra.mxu0 %v2208
        %2230 = vmatprep.subr.bf16.mxu0 0
        %2231 = vmatpush1.bf16.msra.mxu0 %v2209
        %2232 = vmatprep.subr.bf16.mxu0 0
        %2233 = vmatpush1.bf16.msra.mxu0 %v2210
        %2234 = vmatprep.subr.bf16.mxu0 0
        %2235 = vmatpush1.bf16.msra.mxu0 %v2211
        %2236 = vmatprep.subr.bf16.mxu0 0
        %2237 = vmatpush1.bf16.msra.mxu0 0
        %2238 = vmatprep.subr.bf16.mxu0 0
        %2239 = vmatpush1.bf16.msra.mxu0 0
        %2240 = vmatprep.subr.bf16.mxu0 0
        %2241 = vmatpush1.bf16.msra.mxu0 0
        %2242 = vmatprep.subr.bf16.mxu0 0
        %2243 = vmatpush1.bf16.msra.mxu0 0
        %2244 = vmatprep.subr.bf16.mxu0 0
        %2245 = vmatpush1.bf16.msra.mxu0 0
        %2246 = vmatprep.subr.bf16.mxu0 0
        %2247 = vmatpush1.bf16.msra.mxu0 0
        %2248 = vmatprep.subr.bf16.mxu0 0
        %2249 = vmatpush1.bf16.msra.mxu0 0
        %2250 = vmatprep.subr.bf16.mxu0 0
        %2251 = vmatpush1.bf16.msra.mxu0 0
        %2252 = vmatprep.mubr.bf16.mxu0 0
        %2253 = vmatmul.mubr.bf16.gmra.mrb[0].mxu0 %v1945
        %v2254 = vpop.f32.mrb[0].mxu0
        %v2255 = vadd.f32 %v1851, %v2254
        %v2256 = vpop.f32.mrb[0].mxu0
        %v2257 = vpop.f32.mrb[0].mxu0
        %v2258 = vadd.f32 %v1854, %v2257
        %v2259 = vpop.f32.mrb[0].mxu0
        %2260 = vmatprep.mubr.bf16.mxu0 0
        %2261 = vmatmul.mubr.bf16.gmra.mrb[0].mxu0 %v1946
        %v2262 = vpop.f32.mrb[0].mxu0
        %v2263 = vadd.f32 %v1859, %v2262
        %v2264 = vpop.f32.mrb[0].mxu0
        %v2265 = vpop.f32.mrb[0].mxu0
        %v2266 = vadd.f32 %v1862, %v2265
        %v2267 = vpop.f32.mrb[0].mxu0
        %2268 = vmatprep.mubr.bf16.mxu0 0
        %2269 = vmatmul.mubr.bf16.gmra.mrb[0].mxu0 %v1947
        %v2270 = vpop.f32.mrb[0].mxu0
        %v2271 = vadd.f32 %v1867, %v2270
        %v2272 = vpop.f32.mrb[0].mxu0
        %v2273 = vpop.f32.mrb[0].mxu0
        %v2274 = vadd.f32 %v1870, %v2273
        %v2275 = vpop.f32.mrb[0].mxu0
        %2276 = vmatprep.mubr.bf16.mxu0 0
        %2277 = vmatmul.mubr.bf16.gmra.mrb[0].mxu0 %v1948
        %v2278 = vpop.f32.mrb[0].mxu0
        %v2279 = vadd.f32 %v1875, %v2278
        %v2280 = vpop.f32.mrb[0].mxu0
        %v2281 = vpop.f32.mrb[0].mxu0
        %v2282 = vadd.f32 %v1878, %v2281
        %v2283 = vpop.f32.mrb[0].mxu0
        %2284 = vmatprep.mubr.bf16.mxu0 0
        %2285 = vmatmul.mubr.bf16.gmra.mrb[0].mxu0 %v1949
        %v2286 = vpop.f32.mrb[0].mxu0
        %v2287 = vadd.f32 %v1883, %v2286
        %v2288 = vpop.f32.mrb[0].mxu0
        %v2289 = vpop.f32.mrb[0].mxu0
        %v2290 = vadd.f32 %v1886, %v2289
        %v2291 = vpop.f32.mrb[0].mxu0
        %2292 = vmatprep.mubr.bf16.mxu0 0
        %2293 = vmatmul.mubr.bf16.gmra.mrb[0].mxu0 %v1950
        %v2294 = vpop.f32.mrb[0].mxu0
        %v2295 = vadd.f32 %v1891, %v2294
        %v2296 = vpop.f32.mrb[0].mxu0
        %v2297 = vpop.f32.mrb[0].mxu0
        %v2298 = vadd.f32 %v1894, %v2297
        %v2299 = vpop.f32.mrb[0].mxu0
        %2300 = vmatprep.mubr.bf16.mxu0 0
        %2301 = vmatmul.mubr.bf16.gmra.mrb[0].mxu0 %v1951
        %v2302 = vpop.f32.mrb[0].mxu0
        %v2303 = vadd.f32 %v1899, %v2302
        %v2304 = vpop.f32.mrb[0].mxu0
        %v2305 = vpop.f32.mrb[0].mxu0
        %v2306 = vadd.f32 %v1902, %v2305
        %v2307 = vpop.f32.mrb[0].mxu0
        %2308 = vmatprep.mubr.bf16.mxu0 0
        %2309 = vmatmul.mubr.bf16.gmra.mrb[0].mxu0 %v1952
        %v2310 = vpop.f32.mrb[0].mxu0
        %v2311 = vadd.f32 %v1907, %v2310
        %v2312 = vpop.f32.mrb[0].mxu0
        %v2313 = vpop.f32.mrb[0].mxu0
        %v2314 = vadd.f32 %v1910, %v2313
        %v2315 = vpop.f32.mrb[0].mxu0
        %2316 = vdwg.mxu0
        %v2317 = vadd.f32 %v2255, %v2110
        %v2318 = vadd.f32 %v2258, %v2113
        %v2319 = vadd.f32 %v2263, %v2118
        %v2320 = vadd.f32 %v2266, %v2121
        %v2321 = vadd.f32 %v2271, %v2126
        %v2322 = vadd.f32 %v2274, %v2129
        %v2323 = vadd.f32 %v2279, %v2134
        %v2324 = vadd.f32 %v2282, %v2137
        %v2325 = vadd.f32 %v2287, %v2142
        %v2326 = vadd.f32 %v2290, %v2145
        %v2327 = vadd.f32 %v2295, %v2150
        %v2328 = vadd.f32 %v2298, %v2153
        %v2329 = vadd.f32 %v2303, %v2158
        %v2330 = vadd.f32 %v2306, %v2161
        %v2331 = vadd.f32 %v2311, %v2166
        %v2332 = vadd.f32 %v2314, %v2169
        %v2333 = vld [vmem:[#allocation3] sm:$0xff]
        %v2334 = vld [vmem:[#allocation3 + $0x8] sm:$0xff]
        %v2335 = vld [vmem:[#allocation3 + $0x10] sm:$0xff]
        %v2336 = vld [vmem:[#allocation3 + $0x18] sm:$0xff]
        %v2337 = vld [vmem:[#allocation3 + $0x20] sm:$0xff]
        %v2338 = vld [vmem:[#allocation3 + $0x28] sm:$0xff]
        %v2339 = vld [vmem:[#allocation3 + $0x30] sm:$0xff]
        %v2340 = vld [vmem:[#allocation3 + $0x38] sm:$0xff]
        %v2341 = vld [vmem:[#allocation3 + $0x40] sm:$0xff]
        %v2342 = vld [vmem:[#allocation3 + $0x48] sm:$0xff]
        %v2343 = vld [vmem:[#allocation3 + $0x50] sm:$0xff]
        %v2344 = vld [vmem:[#allocation3 + $0x58] sm:$0xff]
        %v2345 = vld [vmem:[#allocation3 + $0x60] sm:$0xff]
        %v2346 = vld [vmem:[#allocation3 + $0x68] sm:$0xff]
        %v2347 = vld [vmem:[#allocation3 + $0x70] sm:$0xff]
        %v2348 = vld [vmem:[#allocation3 + $0x78] sm:$0xff]
        %v2349 = vadd.f32 %v2333, %v2317
        %v2350 = vadd.f32 %v2334, %v2318
        %v2351 = vadd.f32 %v2335, %v2319
        %v2352 = vadd.f32 %v2336, %v2320
        %v2353 = vadd.f32 %v2337, %v2321
        %v2354 = vadd.f32 %v2338, %v2322
        %v2355 = vadd.f32 %v2339, %v2323
        %v2356 = vadd.f32 %v2340, %v2324
        %v2357 = vadd.f32 %v2341, %v2325
        %v2358 = vadd.f32 %v2342, %v2326
        %v2359 = vadd.f32 %v2343, %v2327
        %v2360 = vadd.f32 %v2344, %v2328
        %v2361 = vadd.f32 %v2345, %v2329
        %v2362 = vadd.f32 %v2346, %v2330
        %v2363 = vadd.f32 %v2347, %v2331
        %v2364 = vadd.f32 %v2348, %v2332
        %2365 = vst [vmem:[#allocation3] sm:$0xff] %v2349
        %2366 = vst [vmem:[#allocation3 + $0x8] sm:$0xff] %v2350
        %2367 = vst [vmem:[#allocation3 + $0x10] sm:$0xff] %v2351
        %2368 = vst [vmem:[#allocation3 + $0x18] sm:$0xff] %v2352
        %2369 = vst [vmem:[#allocation3 + $0x20] sm:$0xff] %v2353
        %2370 = vst [vmem:[#allocation3 + $0x28] sm:$0xff] %v2354
        %2371 = vst [vmem:[#allocation3 + $0x30] sm:$0xff] %v2355
        %2372 = vst [vmem:[#allocation3 + $0x38] sm:$0xff] %v2356
        %2373 = vst [vmem:[#allocation3 + $0x40] sm:$0xff] %v2357
        %2374 = vst [vmem:[#allocation3 + $0x48] sm:$0xff] %v2358
        %2375 = vst [vmem:[#allocation3 + $0x50] sm:$0xff] %v2359
        %2376 = vst [vmem:[#allocation3 + $0x58] sm:$0xff] %v2360
        %2377 = vst [vmem:[#allocation3 + $0x60] sm:$0xff] %v2361
        %2378 = vst [vmem:[#allocation3 + $0x68] sm:$0xff] %v2362
        %2379 = vst [vmem:[#allocation3 + $0x70] sm:$0xff] %v2363
        %2380 = vst [vmem:[#allocation3 + $0x78] sm:$0xff] %v2364
        %v2381 = vld [vmem:[#allocation3] sm:$0xff]
        %v2382 = vadd.f32 %v2381, %v420
        %v2383 = vmax.f32 %v2382, 0.0
        %v2384 = vpack.c.bf16 %v2383, %v2383
        %2385 = vst [vmem:[%s232] sm:$0xf] %v2384
        %v2386 = vld [vmem:[#allocation3 + $0x10] sm:$0xff]
        %v2387 = vadd.f32 %v2386, %v421
        %v2388 = vmax.f32 %v2387, 0.0
        %v2389 = vpack.c.bf16 %v2388, %v2388
        %2390 = vst [vmem:[%s232 + $0x4] sm:$0xf] %v2389
        %v2391 = vld [vmem:[#allocation3 + $0x20] sm:$0xff]
        %v2392 = vadd.f32 %v2391, %v422
        %v2393 = vmax.f32 %v2392, 0.0
        %v2394 = vpack.c.bf16 %v2393, %v2393
        %2395 = vst [vmem:[%s232 + $0x8] sm:$0xf] %v2394
        %v2396 = vld [vmem:[#allocation3 + $0x30] sm:$0xff]
        %v2397 = vadd.f32 %v2396, %v423
        %v2398 = vmax.f32 %v2397, 0.0
        %v2399 = vpack.c.bf16 %v2398, %v2398
        %2400 = vst [vmem:[%s232 + $0xc] sm:$0xf] %v2399
        %v2401 = vld [vmem:[#allocation3 + $0x40] sm:$0xff]
        %v2402 = vadd.f32 %v2401, %v424
        %v2403 = vmax.f32 %v2402, 0.0
        %v2404 = vpack.c.bf16 %v2403, %v2403
        %2405 = vst [vmem:[%s232 + $0x10] sm:$0xf] %v2404
        %v2406 = vld [vmem:[#allocation3 + $0x50] sm:$0xff]
        %v2407 = vadd.f32 %v2406, %v425
        %v2408 = vmax.f32 %v2407, 0.0
        %v2409 = vpack.c.bf16 %v2408, %v2408
        %2410 = vst [vmem:[%s232 + $0x14] sm:$0xf] %v2409
        %v2411 = vld [vmem:[#allocation3 + $0x60] sm:$0xff]
        %v2412 = vadd.f32 %v2411, %v426
        %v2413 = vmax.f32 %v2412, 0.0
        %v2414 = vpack.c.bf16 %v2413, %v2413
        %2415 = vst [vmem:[%s232 + $0x18] sm:$0xf] %v2414
        %v2416 = vld [vmem:[#allocation3 + $0x70] sm:$0xff]
        %v2417 = vadd.f32 %v2416, %v427
        %v2418 = vmax.f32 %v2417, 0.0
        %v2419 = vpack.c.bf16 %v2418, %v2418
        %2420 = vst [vmem:[%s232 + $0x1c] sm:$0xf] %v2419
        %s2421 = sand.u32 %s138, 1
        %s2422 = scalar_lea.sflag [#allocation6], %s2421
        %s2423 = sand.u32 %s138, 1
        %s2424 = smul.addr %s2423, 32
        %s2425 = scalar_lea.vmem [#allocation7], %s2424
        // Predicated region
        $region45: #{tpu_custom_call.1} parent=39 // pred_check
          %p2426 = pneg %p148
        $region46: #{tpu_custom_call.1} parent=39 // pred_check_branch
          %2428 = sbr.rel (%p2426) target = $region48
        $region47: #{tpu_custom_call.1} parent=39 // pred_region
          %s2430 = ssub.s32 512, 512
          %2431 = vsyncadd %s2422, %s2430
          %s2432 = smul.addr %s20, 8
          %s2433 = smul.addr %s2432, 64
          %s2434 = scalar_lea.hbm %s5, %s2433
          %s2435 = sshll.u32 %s2425, 4
          %s2436 = int_to_ptr.vmem [resolvable:$true] %s2435
          %2441 = dma.vmem_to_hbm [thread:$0]  %s2436, 512, %s2434, %s2422, 64, 64, 4
        $region48: #{tpu_custom_call.1} parent=39 // pred_fallthru
          _
      $region40: #{tpu_custom_call.1} parent=5 // pred_fallthru
        _
      %p2442 = scmp.le.s32.totalorder 2, %s15
      // Predicated region
      $region49: #{tpu_custom_call.1} parent=5 // pred_check
        %p2443 = pneg %p2442
      $region50: #{tpu_custom_call.1} parent=5 // pred_check_branch
        %2445 = sbr.rel (%p2443) target = $region52
      $region51: #{tpu_custom_call.1} parent=5 // pred_region
        %s2446 = ssub.s32 %s15, 2
        // Predicated region
        $region53: #{tpu_custom_call.1} parent=51 // pred_check
          %p2447 = pneg %p154
        $region54: #{tpu_custom_call.1} parent=51 // pred_check_branch
          %2449 = sbr.rel (%p2447) target = $region56
        $region55: #{tpu_custom_call.1} parent=51 // pred_region
          %s2450 = sand.u32 %s139, 1
          %s2451 = scalar_lea.sflag [#allocation6], %s2450
          %s2452 = sand.u32 %s139, 1
          %s2453 = smul.addr %s2452, 32
          %s2454 = scalar_lea.vmem [#allocation7], %s2453
          %2455 = dma.done %s2451, 512
        $region56: #{tpu_custom_call.1} parent=51 // pred_fallthru
          _
      $region52: #{tpu_custom_call.1} parent=5 // pred_fallthru
        _
    $region6: #{tpu_custom_call.1} parent=1 // loop_footer
      %s19 = sadd.s32 1, %s15
    $region7: #{tpu_custom_call.1} parent=1 // loop_footer_branch
      %14 = sbr.rel target = $region3
    $region8: #{tpu_custom_call.1} parent=1 // loop_exit
      _
    %2456 = vsyncpa [#allocation5], 1
    %s2457 = scalar_lea.sflag [#allocation5], 1
    %2458 = vsyncpa %s2457, 1
    %2459 = vsyncpa [#allocation6], 1
    %s2460 = scalar_lea.sflag [#allocation6], 1
    %2461 = vsyncpa %s2460, 1

</llo_original>
